<compile_context>
chip_gen: v6e
topology: v6e:2x2x1
jax: 0.10.0
libtpu: 0.0.40
codegen_flags: <defaults>
</compile_context>

<pallas_src>
import functools

import jax
import jax.numpy as jnp
from jax import lax
from jax.experimental import pallas as pl
from jax.experimental.pallas import tpu as pltpu

_LANE = 128


def _round_up(x, m):
    return (x + m - 1) // m * m


def _cdiv(a, b):
    return -(-a // b)


def _pad_axis(a, size, axis):
    if a.shape[axis] == size:
        return a
    pad = [(0, 0)] * a.ndim
    pad[axis] = (0, size - a.shape[axis])
    return jnp.pad(a, pad)


def _chip_budgets():
    """(vmem_limit_bytes, per-call tile budget bytes, #TensorCores)."""
    phys = 128 << 20
    try:
        info = pltpu.get_tpu_info()
        for attr in ("vmem_capacity_bytes", "vmem_bytes", "vmem_size_bytes"):
            v = getattr(info, attr, None)
            if v:
                phys = int(v)
                break
    except Exception:            # no TPU info available -> conservative defaults
        pass
    if phys <= (64 << 20):       # v7x-class: 64 MiB physical VMEM, 2 TensorCores
        return (40 << 20, 12 << 20, 2)
    return (48 << 20, 20 << 20, 1)   # v5e / v6e: 128 MiB physical, 1 TC


# ----------------------------------------------------------------------------
# Pallas kernels
# ----------------------------------------------------------------------------
def _conv1x1_bn_relu_kernel(x_ref, w_ref, b_ref, o_ref):
    # y = relu(x @ w + b)   (BN scale pre-folded into w)
    y = jnp.dot(x_ref[...], w_ref[...], preferred_element_type=jnp.float32)
    o_ref[...] = jnp.maximum(y + b_ref[...], 0.0).astype(o_ref.dtype)


def _conv2_then_conv3(x_ref, w2_ref, b2_ref, w3_ref, b3_ref, *, s, Wop, tr):
    # x_ref : (s, tr + qmax*Wop, 3*C1p) bf16  -- kw taps packed into channels.
    # w2_ref: (3, 3*C1p, C1p) bf16           -- one K=3*C1p matmul per kh tap.
    acc = None
    for kh in range(3):
        q, r = divmod(kh, s)
        lo = q * Wop                                   # multiple of 8 (aligned)
        win = x_ref[r, lo:lo + tr, :]                  # (tr, 3*C1p) static view
        d = jnp.dot(win, w2_ref[kh], preferred_element_type=jnp.float32)
        acc = d if acc is None else acc + d            # value accumulation
    out2 = jnp.maximum(acc + b2_ref[...], 0.0).astype(jnp.bfloat16)
    # conv3 (1x1 expansion) fused in: out2 never leaves VMEM.
    return jnp.dot(out2, w3_ref[...], preferred_element_type=jnp.float32) + b3_ref[...]


def _tail_identity_kernel(x_ref, r_ref, w2_ref, b2_ref, w3_ref, b3_ref, o_ref,
                          *, s, Wop, tr):
    y = _conv2_then_conv3(x_ref, w2_ref, b2_ref, w3_ref, b3_ref,
                          s=s, Wop=Wop, tr=tr)
    y = y + r_ref[...].astype(jnp.float32)             # identity shortcut (bf16 stream)
    o_ref[...] = jnp.maximum(y, 0.0).astype(o_ref.dtype)


def _tail_project_kernel(x_ref, r_ref, w2_ref, b2_ref, w3_ref, b3_ref,
                         ws_ref, bs_ref, o_ref, *, s, Wop, tr):
    y = _conv2_then_conv3(x_ref, w2_ref, b2_ref, w3_ref, b3_ref,
                          s=s, Wop=Wop, tr=tr)
    y = y + jnp.dot(r_ref[...], ws_ref[...],
                    preferred_element_type=jnp.float32) + bs_ref[...]
    o_ref[...] = jnp.maximum(y, 0.0).astype(o_ref.dtype)


# ----------------------------------------------------------------------------
# conv1 (1x1) wrapper
# ----------------------------------------------------------------------------
def _pick_rows_tile(M, bytes_per_row, const_bytes, tile_budget, num_tc, want=1024):
    tm = min(want, _round_up(M, 16))
    tm = max(16, tm - tm % 16)
    while tm > 16 and 2 * tm * bytes_per_row + 2 * const_bytes > tile_budget:
        tm = max(16, _round_up(tm // 2, 16))
    # v7x (2 TCs): make sure the parallel grid has >= 2 steps on big problems.
    if num_tc > 1 and M >= 256 and _cdiv(M, tm) < num_tc:
        tm = max(16, _round_up(_cdiv(M, num_tc), 16))
    if M % tm:
        # prefer a multiple-of-16 divisor of M (avoids the row-padding copy)
        for cand in range(tm, max(128, tm // 2) - 1, -16):
            if cand >= 16 and M % cand == 0:
                return cand
        # otherwise rebalance tiles so padding is minimal
        T = _cdiv(M, tm)
        tm = max(16, _round_up(_cdiv(M, T), 16))
    return tm


def conv1x1_bn_relu(x2d, w, b, budgets, out_dtype=jnp.bfloat16):
    vmem_limit, tile_budget, num_tc = budgets
    M, Cin = x2d.shape
    Cout = w.shape[1]
    bytes_per_row = (Cin + Cout) * 2                      # bf16 in + bf16 out
    const_bytes = int(w.size) * 2 + int(b.size) * 4
    tm = _pick_rows_tile(M, bytes_per_row, const_bytes, tile_budget, num_tc)
    Mp = _cdiv(M, tm) * tm
    xin = jnp.pad(x2d, ((0, Mp - M), (0, 0))) if Mp != M else x2d

    out = pl.pallas_call(
        _conv1x1_bn_relu_kernel,
        out_shape=jax.ShapeDtypeStruct((Mp, Cout), out_dtype),
        grid=(Mp // tm,),
        in_specs=[pl.BlockSpec((tm, Cin), lambda i: (i, 0)),
                  pl.BlockSpec(w.shape, lambda i: (0, 0)),
                  pl.BlockSpec(b.shape, lambda i: (0, 0))],
        out_specs=pl.BlockSpec((tm, Cout), lambda i: (i, 0)),
        compiler_params=pltpu.CompilerParams(
            dimension_semantics=("parallel",),
            vmem_limit_bytes=vmem_limit),
    )(xin, w, b)
    return out[:M] if Mp != M else out


# ----------------------------------------------------------------------------
# Fused conv2(3x3)+bn2+relu -> conv3(1x1)+bn3 -> shortcut add -> relu
# ----------------------------------------------------------------------------
def _gather_conv2_windows(out1, s, Ho, Wo, Wop, tr, T):
    """Compact gathered layout of out1, pre-cut into halo-inclusive row tiles."""
    Nb, H, W, C1p = out1.shape
    qmax = 2 // s                       # max whole-stride row offset of a tap
    PH = Ho + qmax
    extra_h = max(0, s * PH - (H + 2))
    xp = jnp.pad(out1, ((0, 0), (1, 1 + extra_h), (1, 1), (0, 0)))
    # per kw tap: gather the stride-s columns; pack kw into the channel dim.
    cols = [lax.slice_in_dim(xp, kw, kw + s * (Wo - 1) + 1, stride=s, axis=2)
            for kw in range(3)]                      # each (Nb, Hp, Wo, C1p)
    g = jnp.stack(cols, axis=3)                      # (Nb, Hp, Wo, 3, C1p)
    if Wop != Wo:                                    # sublane-align row width
        g = jnp.pad(g, ((0, 0), (0, 0), (0, Wop - Wo), (0, 0), (0, 0)))
    # split rows into the s row-phases; flatten (row, col).
    phases = [lax.slice_in_dim(g, r, r + s * (PH - 1) + 1, stride=s, axis=1)
              for r in range(s)]                     # each (Nb, PH, Wop, 3, C1p)
    ph = jnp.stack(phases, axis=1)                   # (Nb, s, PH, Wop, 3, C1p)
    ph = ph.reshape(Nb, s, PH * Wop, 3 * C1p)
    need = T * tr + qmax * Wop
    if need > PH * Wop:
        ph = jnp.pad(ph, ((0, 0), (0, 0), (0, need - PH * Wop), (0, 0)))
    trh = tr + qmax * Wop
    if T == 1:
        xw = ph[:, :, :trh, :][:, None]              # (Nb, 1, s, trh, 3*C1p)
    else:
        xw = jnp.stack([ph[:, :, t * tr:t * tr + trh, :] for t in range(T)],
                       axis=1)                       # (Nb, T, s, trh, 3*C1p)
    return xw.reshape(Nb * T, s, trh, 3 * C1p).astype(jnp.bfloat16)


def _residual_rows(res_src, Wop, T, tr):
    """Lay the shortcut operand out as (Nb*T, tr, C) bf16 rows."""
    Nb, Ho, Wo, C = res_src.shape
    r = res_src
    if Wop != Wo:
        r = jnp.pad(r, ((0, 0), (0, 0), (0, Wop - Wo), (0, 0)))
    r = r.reshape(Nb, Ho * Wop, C)
    if T * tr > Ho * Wop:
        r = jnp.pad(r, ((0, 0), (0, T * tr - Ho * Wop), (0, 0)))
    return r.reshape(Nb * T, tr, C).astype(jnp.bfloat16)


def bottleneck_tail(out1, res_src, prep, budgets):
    vmem_limit, tile_budget, num_tc = budgets
    Nb, H, W, C1p = out1.shape
    s = prep["stride"]
    project = "wsf" in prep
    Ho = (H - 1) // s + 1
    Wo = (W - 1) // s + 1
    Wop = _round_up(Wo, 8)              # sublane-aligned row width
    qmax = 2 // s
    C3p = prep["w3f"].shape[1]
    Cres = res_src.shape[-1]
    Mimg = Ho * Wop

    consts = [prep["w2f"], prep["b2"], prep["w3f"], prep["b3"]]
    if project:
        consts += [prep["wsf"], prep["bs"]]
    const_bytes = sum(int(c.size) * c.dtype.itemsize for c in consts)

    def tile_bytes(tr):
        xb = s * (tr + qmax * Wop) * 3 * C1p * 2      # gathered window (bf16)
        rb = tr * Cres * 2                            # residual rows (bf16)
        ob = tr * C3p * 4                             # output tile (f32)
        live = tr * C1p * 6                           # f32 acc + bf16 out2
        return 2 * (xb + rb + ob) + live              # x2: double-buffered

    tr = _round_up(min(Mimg, 1024), 8)
    while tr > 8 and (tile_bytes(tr) > tile_budget
                      or tile_bytes(tr) + 2 * const_bytes > vmem_limit - (4 << 20)):
        tr = max(8, _round_up(tr // 2, 8))
    T = _cdiv(Mimg, tr)
    if num_tc > 1 and Nb * T < num_tc and Mimg >= 16:
        T = num_tc
    tr = _round_up(_cdiv(Mimg, T), 8)                 # rebalance: minimal waste
    T = _cdiv(Mimg, tr)
    trh = tr + qmax * Wop

    xw = _gather_conv2_windows(out1, s, Ho, Wo, Wop, tr, T)
    rr = _residual_rows(res_src, Wop, T, tr)

    kern = functools.partial(
        _tail_project_kernel if project else _tail_identity_kernel,
        s=s, Wop=Wop, tr=tr)

    in_specs = [pl.BlockSpec((None, s, trh, 3 * C1p), lambda i: (i, 0, 0, 0)),
                pl.BlockSpec((None, tr, Cres), lambda i: (i, 0, 0))]
    in_specs += [pl.BlockSpec(c.shape, lambda i, nd=c.ndim: (0,) * nd)
                 for c in consts]

    out = pl.pallas_call(
        kern,
        out_shape=jax.ShapeDtypeStruct((Nb * T, tr, C3p), jnp.float32),
        grid=(Nb * T,),
        in_specs=in_specs,
        out_specs=pl.BlockSpec((None, tr, C3p), lambda i: (i, 0, 0)),
        compiler_params=pltpu.CompilerParams(
            dimension_semantics=("parallel",),
            vmem_limit_bytes=vmem_limit),
    )(xw, rr, *consts)

    out = out.reshape(Nb, T * tr, C3p)[:, :Mimg, :]
    out = out.reshape(Nb, Ho, Wop, C3p)[:, :, :Wo, :prep["out_planes"]]
    return out                                       # (Nb, Ho, Wo, out_planes) f32


# ----------------------------------------------------------------------------
# Parameter preparation (ONCE, outside the forward path)
# ----------------------------------------------------------------------------
def prepare_params(p, stride, eps=1e-5):
    planes = p["w1"].shape[0]
    in_planes = p["w1"].shape[1]
    out_planes = p["w3"].shape[0]
    C1p = _round_up(planes, _LANE)       # lane-dense output channels
    C3p = _round_up(out_planes, _LANE)

    def fold(gamma, beta, mean, var):
        scale = gamma / jnp.sqrt(var + eps)
        return scale, beta - mean * scale

    # conv1 (1x1): fold BN1 scale into the weight.
    s1, b1 = fold(*p["bn1"])
    w1 = (p["w1"].reshape(planes, in_planes) * s1[:, None]).T   # (Cin, planes)
    w1 = _pad_axis(w1, C1p, 1).astype(jnp.bfloat16)
    b1 = _pad_axis(b1.reshape(1, -1), C1p, 1)                   # f32

    # conv2 (3x3): per-kh weight with the 3 kw taps stacked along K (= 3*C1p).
    s2, b2 = fold(*p["bn2"])
    w2 = p["w2"] * s2[:, None, None, None]                      # (Cout,Cin,3,3)
    w2 = jnp.transpose(w2, (2, 3, 1, 0))                        # (kh,kw,Cin,Cout)
    w2 = _pad_axis(_pad_axis(w2, C1p, 2), C1p, 3)               # (3,3,C1p,C1p)
    w2 = w2.reshape(3, 3 * C1p, C1p).astype(jnp.bfloat16)       # K packs (kw,cin)
    b2 = _pad_axis(b2.reshape(1, -1), C1p, 1)

    # conv3 (1x1 expansion): BN3 scale folded.
    s3, b3 = fold(*p["bn3"])
    w3 = (p["w3"].reshape(out_planes, planes) * s3[:, None]).T  # (planes, out)
    w3 = _pad_axis(_pad_axis(w3, C1p, 0), C3p, 1).astype(jnp.bfloat16)
    b3 = _pad_axis(b3.reshape(1, -1), C3p, 1)

    prep = dict(stride=stride, out_planes=out_planes,
                w1f=w1, b1=b1, w2f=w2, b2=b2, w3f=w3, b3=b3)

    if "ws" in p:
        ss, bs = fold(*p["bns"])
        ws = (p["ws"].reshape(out_planes, in_planes) * ss[:, None]).T
        prep["wsf"] = _pad_axis(ws, C3p, 1).astype(jnp.bfloat16)
        prep["bs"] = _pad_axis(bs.reshape(1, -1), C3p, 1)
    return prep


# ----------------------------------------------------------------------------
# Forward pass (NCHW in / NCHW out, like the PyTorch module)
# ----------------------------------------------------------------------------
def bottleneck_forward(x_nchw, prep, budgets=None):
    if budgets is None:
        budgets = _chip_budgets()
    s = prep["stride"]
    x = jnp.transpose(x_nchw, (0, 2, 3, 1))            # NHWC
    Nb, H, W, Cin = x.shape

    # conv1 (1x1) + bn1 + relu
    out1 = conv1x1_bn_relu(
        x.reshape(Nb * H * W, Cin).astype(jnp.bfloat16),
        prep["w1f"], prep["b1"], budgets)
    C1p = out1.shape[1]
    out1 = out1.reshape(Nb, H, W, C1p)

    # shortcut operand for the fused tail kernel
    if "wsf" in prep:
        # projection shortcut: stride-s spatial subsample of x (matmul in-kernel)
        # TODO(synk): express this subsample via a strided in-kernel slice.
        res_src = x[:, ::s, ::s, :]
    else:
        assert s == 1, "identity shortcut requires stride == 1"
        C3p = prep["w3f"].shape[1]
        res_src = _pad_axis(x.astype(jnp.bfloat16), C3p, 3)

    # conv2 (3x3,s,p=1)+bn2+relu -> conv3 (1x1)+bn3 -> +shortcut -> relu, fused
    out3 = bottleneck_tail(out1, res_src, prep, budgets)
    return jnp.transpose(out3, (0, 3, 1, 2)).astype(jnp.float32)


# ----------------------------------------------------------------------------
# Parameter init + pure-JAX reference (correctness check)
# ----------------------------------------------------------------------------
def init_params(key, in_planes, planes, stride):
    exp = 4
    out_planes = exp * planes
    ks = jax.random.split(key, 8)

    def conv_w(k, cout, cin, kh, kw):
        return 0.1 * jax.random.normal(k, (cout, cin, kh, kw), jnp.float32)

    def bn_params(k, c):
        k1, k2, k3, k4 = jax.random.split(k, 4)
        gamma = 1.0 + 0.1 * jax.random.normal(k1, (c,), jnp.float32)
        beta = 0.1 * jax.random.normal(k2, (c,), jnp.float32)
        mean = 0.1 * jax.random.normal(k3, (c,), jnp.float32)
        var = jnp.abs(jax.random.normal(k4, (c,), jnp.float32)) + 0.5
        return (gamma, beta, mean, var)

    p = {
        "w1": conv_w(ks[0], planes, in_planes, 1, 1),
        "bn1": bn_params(ks[1], planes),
        "w2": conv_w(ks[2], planes, planes, 3, 3),
        "bn2": bn_params(ks[3], planes),
        "w3": conv_w(ks[4], out_planes, planes, 1, 1),
        "bn3": bn_params(ks[5], out_planes),
    }
    if stride != 1 or in_planes != out_planes:
        p["ws"] = conv_w(ks[6], out_planes, in_planes, 1, 1)
        p["bns"] = bn_params(ks[7], out_planes)
    return p


def _conv_ref(x, w, stride=1, padding=0):
    return lax.conv_general_dilated(
        x, w, (stride, stride), [(padding, padding)] * 2,
        dimension_numbers=("NCHW", "OIHW", "NCHW"))


def _bn_ref(y, bn, eps=1e-5):
    gamma, beta, mean, var = (v[None, :, None, None] for v in bn)
    return (y - mean) / jnp.sqrt(var + eps) * gamma + beta


def bottleneck_ref(x, p, stride):
    out = jax.nn.relu(_bn_ref(_conv_ref(x, p["w1"]), p["bn1"]))
    out = jax.nn.relu(_bn_ref(_conv_ref(out, p["w2"], stride, 1), p["bn2"]))
    out = _bn_ref(_conv_ref(out, p["w3"]), p["bn3"])
    if "ws" in p:
        sc = _bn_ref(_conv_ref(x, p["ws"], stride), p["bns"])
    else:
        sc = x
    return jax.nn.relu(out + sc)


# ----------------------------------------------------------------------------
if __name__ == "__main__":
    key = jax.random.PRNGKey(0)
    kx1, kp1, kx2, kp2 = jax.random.split(key, 4)
    budgets = _chip_budgets()

    # Downsampling block: projection shortcut, stride 2.
    batch, in_planes, planes, hw, stride = 2, 8, 4, 16, 2
    x1 = jax.random.normal(kx1, (batch, in_planes, hw, hw), jnp.float32)
    p1 = init_params(kp1, in_planes, planes, stride)
    prep1 = prepare_params(p1, stride)
    fwd1 = jax.jit(lambda v: bottleneck_forward(v, prep1, budgets))
    o1 = jax.block_until_ready(fwd1(x1))
    r1 = jax.block_until_ready(bottleneck_ref(x1, p1, stride))
    assert o1.shape == r1.shape == (batch, 4 * planes, hw // stride, hw // stride)
    # bf16 matmul operands + bf16 residual stream -> relaxed tolerance vs f32 ref.
    assert jnp.allclose(o1, r1, rtol=4e-2, atol=4e-2), "mismatch (projection block)"

    # Identity-shortcut block: stride 1, in_planes == expansion * planes.
    in_planes2, planes2, stride2 = 16, 4, 1
    x2 = jax.random.normal(kx2, (batch, in_planes2, hw, hw), jnp.float32)
    p2 = init_params(kp2, in_planes2, planes2, stride2)
    prep2 = prepare_params(p2, stride2)
    fwd2 = jax.jit(lambda v: bottleneck_forward(v, prep2, budgets))
    o2 = jax.block_until_ready(fwd2(x2))
    r2 = jax.block_until_ready(bottleneck_ref(x2, p2, stride2))
    assert o2.shape == r2.shape == (batch, 4 * planes2, hw, hw)
    assert jnp.allclose(o2, r2, rtol=4e-2, atol=4e-2), "mismatch (identity block)"

    print("KERNEL_OK")
</pallas_src>

<mosaic_0001>
module attributes {stable_mosaic.version = 11 : i64} {
  func.func @_conv1x1_bn_relu_kernel(%arg0: i32, %arg1: memref<512x8xbf16, #tpu.memory_space<vmem>>, %arg2: memref<8x128xbf16, #tpu.memory_space<vmem>>, %arg3: memref<1x128xf32, #tpu.memory_space<vmem>>, %arg4: memref<512x128xbf16, #tpu.memory_space<vmem>>) attributes {dimension_semantics = [#tpu.dimension_semantics<parallel>], iteration_bounds = array<i64: 1>, scalar_prefetch = 0 : i64, scratch_operands = 0 : i64, tpu.core_type = #tpu.core_type<tc>, window_params = [{transform_indices = @transform_0, window_bounds = array<i64: 512, 8>}, {pipeline_mode = #tpu.pipeline_mode<synchronous>, transform_indices = @transform_1, window_bounds = array<i64: 8, 128>}, {pipeline_mode = #tpu.pipeline_mode<synchronous>, transform_indices = @transform_2, window_bounds = array<i64: 1, 128>}, {transform_indices = @transform_3, window_bounds = array<i64: 512, 128>}]} {
    %c0 = arith.constant 0 : index
    %c0_0 = arith.constant 0 : index
    %0 = vector.load %arg1[%c0, %c0_0] : memref<512x8xbf16, #tpu.memory_space<vmem>>, vector<512x8xbf16>
    %c0_1 = arith.constant 0 : index
    %c0_2 = arith.constant 0 : index
    %1 = vector.load %arg2[%c0_1, %c0_2] : memref<8x128xbf16, #tpu.memory_space<vmem>>, vector<8x128xbf16>
    %cst = arith.constant dense<0.000000e+00> : vector<512x128xf32>
    %2 = tpu.matmul %0, %1, %cst {dimension_numbers = #tpu.dot_dimension_numbers<[1], [0], [0], [1], [0, 0, 1, 1], [], []>} : vector<512x8xbf16>, vector<8x128xbf16>, vector<512x128xf32> -> vector<512x128xf32>
    %c0_3 = arith.constant 0 : index
    %c0_4 = arith.constant 0 : index
    %3 = vector.load %arg3[%c0_3, %c0_4] : memref<1x128xf32, #tpu.memory_space<vmem>>, vector<1x128xf32>
    %4 = vector.broadcast %3 : vector<1x128xf32> to vector<512x128xf32>
    %5 = arith.addf %2, %4 : vector<512x128xf32>
    %cst_5 = arith.constant 0.000000e+00 : f32
    %6 = vector.broadcast %cst_5 : f32 to vector<512x128xf32>
    %7 = arith.maximumf %5, %6 : vector<512x128xf32>
    %8 = arith.truncf %7 : vector<512x128xf32> to vector<512x128xbf16>
    %c0_6 = arith.constant 0 : index
    %c0_7 = arith.constant 0 : index
    %9 = vector.load %arg4[%c0_6, %c0_7] : memref<512x128xbf16, #tpu.memory_space<vmem>>, vector<512x128xbf16>
    tpu.vector_store %arg4[%c0_6, %c0_7], %8 {strides = array<i32>} : memref<512x128xbf16, #tpu.memory_space<vmem>>, vector<512x128xbf16>,
    return
  }
  func.func @transform_0(%arg0: i32) -> (i32, i32) {
    %c0_i32 = arith.constant 0 : i32
    %c0_i32_0 = arith.constant 0 : i32
    return %arg0, %c0_i32 : i32, i32
  }
  func.func @transform_1(%arg0: i32) -> (i32, i32) {
    %c0_i32 = arith.constant 0 : i32
    %c0_i32_0 = arith.constant 0 : i32
    %c0_i32_1 = arith.constant 0 : i32
    return %c0_i32, %c0_i32_0 : i32, i32
  }
  func.func @transform_2(%arg0: i32) -> (i32, i32) {
    %c0_i32 = arith.constant 0 : i32
    %c0_i32_0 = arith.constant 0 : i32
    %c0_i32_1 = arith.constant 0 : i32
    return %c0_i32, %c0_i32_0 : i32, i32
  }
  func.func @transform_3(%arg0: i32) -> (i32, i32) {
    %c0_i32 = arith.constant 0 : i32
    %c0_i32_0 = arith.constant 0 : i32
    return %arg0, %c0_i32 : i32, i32
  }
}

module attributes {stable_mosaic.version = 11 : i64} {
  func.func @_tail_project_kernel(%arg0: i32, %arg1: memref<1x2x72x384xbf16, #tpu.memory_space<vmem>>, %arg2: memref<1x64x8xbf16, #tpu.memory_space<vmem>>, %arg3: memref<3x384x128xbf16, #tpu.memory_space<vmem>>, %arg4: memref<1x128xf32, #tpu.memory_space<vmem>>, %arg5: memref<128x128xbf16, #tpu.memory_space<vmem>>, %arg6: memref<1x128xf32, #tpu.memory_space<vmem>>, %arg7: memref<8x128xbf16, #tpu.memory_space<vmem>>, %arg8: memref<1x128xf32, #tpu.memory_space<vmem>>, %arg9: memref<1x64x128xf32, #tpu.memory_space<vmem>>) attributes {dimension_semantics = [#tpu.dimension_semantics<parallel>], iteration_bounds = array<i64: 2>, scalar_prefetch = 0 : i64, scratch_operands = 0 : i64, tpu.core_type = #tpu.core_type<tc>, window_params = [{transform_indices = @transform_0, window_bounds = array<i64: 1, 2, 72, 384>}, {transform_indices = @transform_1, window_bounds = array<i64: 1, 64, 8>}, {pipeline_mode = #tpu.pipeline_mode<synchronous>, transform_indices = @transform_2, window_bounds = array<i64: 3, 384, 128>}, {pipeline_mode = #tpu.pipeline_mode<synchronous>, transform_indices = @transform_3, window_bounds = array<i64: 1, 128>}, {pipeline_mode = #tpu.pipeline_mode<synchronous>, transform_indices = @transform_4, window_bounds = array<i64: 128, 128>}, {pipeline_mode = #tpu.pipeline_mode<synchronous>, transform_indices = @transform_5, window_bounds = array<i64: 1, 128>}, {pipeline_mode = #tpu.pipeline_mode<synchronous>, transform_indices = @transform_6, window_bounds = array<i64: 8, 128>}, {pipeline_mode = #tpu.pipeline_mode<synchronous>, transform_indices = @transform_7, window_bounds = array<i64: 1, 128>}, {transform_indices = @transform_8, window_bounds = array<i64: 1, 64, 128>}]} {
    %c0 = arith.constant 0 : index
    %c0_0 = arith.constant 0 : index
    %c0_1 = arith.constant 0 : index
    %c0_2 = arith.constant 0 : index
    %0 = vector.load %arg1[%c0, %c0_0, %c0_1, %c0_2] : memref<1x2x72x384xbf16, #tpu.memory_space<vmem>>, vector<1x1x64x384xbf16>
    %1 = vector.shape_cast %0 : vector<1x1x64x384xbf16> to vector<64x384xbf16>
    %c0_3 = arith.constant 0 : index
    %c0_4 = arith.constant 0 : index
    %c0_5 = arith.constant 0 : index
    %2 = vector.load %arg3[%c0_3, %c0_4, %c0_5] : memref<3x384x128xbf16, #tpu.memory_space<vmem>>, vector<1x384x128xbf16>
    %3 = vector.shape_cast %2 : vector<1x384x128xbf16> to vector<384x128xbf16>
    %cst = arith.constant dense<0.000000e+00> : vector<64x128xf32>
    %4 = tpu.matmul %1, %3, %cst {dimension_numbers = #tpu.dot_dimension_numbers<[1], [0], [0], [1], [0, 0, 1, 1], [], []>} : vector<64x384xbf16>, vector<384x128xbf16>, vector<64x128xf32> -> vector<64x128xf32>
    %c0_6 = arith.constant 0 : index
    %c1 = arith.constant 1 : index
    %c0_7 = arith.constant 0 : index
    %c0_8 = arith.constant 0 : index
    %5 = vector.load %arg1[%c0_6, %c1, %c0_7, %c0_8] : memref<1x2x72x384xbf16, #tpu.memory_space<vmem>>, vector<1x1x64x384xbf16>
    %6 = vector.shape_cast %5 : vector<1x1x64x384xbf16> to vector<64x384xbf16>
    %c1_9 = arith.constant 1 : index
    %c0_10 = arith.constant 0 : index
    %c0_11 = arith.constant 0 : index
    %7 = vector.load %arg3[%c1_9, %c0_10, %c0_11] : memref<3x384x128xbf16, #tpu.memory_space<vmem>>, vector<1x384x128xbf16>
    %8 = vector.shape_cast %7 : vector<1x384x128xbf16> to vector<384x128xbf16>
    %cst_12 = arith.constant dense<0.000000e+00> : vector<64x128xf32>
    %9 = tpu.matmul %6, %8, %cst_12 {dimension_numbers = #tpu.dot_dimension_numbers<[1], [0], [0], [1], [0, 0, 1, 1], [], []>} : vector<64x384xbf16>, vector<384x128xbf16>, vector<64x128xf32> -> vector<64x128xf32>
    %10 = arith.addf %4, %9 : vector<64x128xf32>
    %c0_13 = arith.constant 0 : index
    %c0_14 = arith.constant 0 : index
    %c8 = arith.constant 8 : index
    %c0_15 = arith.constant 0 : index
    %11 = vector.load %arg1[%c0_13, %c0_14, %c8, %c0_15] : memref<1x2x72x384xbf16, #tpu.memory_space<vmem>>, vector<1x1x64x384xbf16>
    %12 = vector.shape_cast %11 : vector<1x1x64x384xbf16> to vector<64x384xbf16>
    %c2 = arith.constant 2 : index
    %c0_16 = arith.constant 0 : index
    %c0_17 = arith.constant 0 : index
    %13 = vector.load %arg3[%c2, %c0_16, %c0_17] : memref<3x384x128xbf16, #tpu.memory_space<vmem>>, vector<1x384x128xbf16>
    %14 = vector.shape_cast %13 : vector<1x384x128xbf16> to vector<384x128xbf16>
    %cst_18 = arith.constant dense<0.000000e+00> : vector<64x128xf32>
    %15 = tpu.matmul %12, %14, %cst_18 {dimension_numbers = #tpu.dot_dimension_numbers<[1], [0], [0], [1], [0, 0, 1, 1], [], []>} : vector<64x384xbf16>, vector<384x128xbf16>, vector<64x128xf32> -> vector<64x128xf32>
    %16 = arith.addf %10, %15 : vector<64x128xf32>
    %c0_19 = arith.constant 0 : index
    %c0_20 = arith.constant 0 : index
    %17 = vector.load %arg4[%c0_19, %c0_20] : memref<1x128xf32, #tpu.memory_space<vmem>>, vector<1x128xf32>
    %18 = vector.broadcast %17 : vector<1x128xf32> to vector<64x128xf32>
    %19 = arith.addf %16, %18 : vector<64x128xf32>
    %cst_21 = arith.constant 0.000000e+00 : f32
    %20 = vector.broadcast %cst_21 : f32 to vector<64x128xf32>
    %21 = arith.maximumf %19, %20 : vector<64x128xf32>
    %22 = arith.truncf %21 : vector<64x128xf32> to vector<64x128xbf16>
    %c0_22 = arith.constant 0 : index
    %c0_23 = arith.constant 0 : index
    %23 = vector.load %arg5[%c0_22, %c0_23] : memref<128x128xbf16, #tpu.memory_space<vmem>>, vector<128x128xbf16>
    %cst_24 = arith.constant dense<0.000000e+00> : vector<64x128xf32>
    %24 = tpu.matmul %22, %23, %cst_24 {dimension_numbers = #tpu.dot_dimension_numbers<[1], [0], [0], [1], [0, 0, 1, 1], [], []>} : vector<64x128xbf16>, vector<128x128xbf16>, vector<64x128xf32> -> vector<64x128xf32>
    %c0_25 = arith.constant 0 : index
    %c0_26 = arith.constant 0 : index
    %25 = vector.load %arg6[%c0_25, %c0_26] : memref<1x128xf32, #tpu.memory_space<vmem>>, vector<1x128xf32>
    %26 = vector.broadcast %25 : vector<1x128xf32> to vector<64x128xf32>
    %27 = arith.addf %24, %26 : vector<64x128xf32>
    %c0_27 = arith.constant 0 : index
    %c0_28 = arith.constant 0 : index
    %c0_29 = arith.constant 0 : index
    %28 = vector.load %arg2[%c0_27, %c0_28, %c0_29] : memref<1x64x8xbf16, #tpu.memory_space<vmem>>, vector<1x64x8xbf16>
    %29 = vector.shape_cast %28 : vector<1x64x8xbf16> to vector<64x8xbf16>
    %c0_30 = arith.constant 0 : index
    %c0_31 = arith.constant 0 : index
    %30 = vector.load %arg7[%c0_30, %c0_31] : memref<8x128xbf16, #tpu.memory_space<vmem>>, vector<8x128xbf16>
    %cst_32 = arith.constant dense<0.000000e+00> : vector<64x128xf32>
    %31 = tpu.matmul %29, %30, %cst_32 {dimension_numbers = #tpu.dot_dimension_numbers<[1], [0], [0], [1], [0, 0, 1, 1], [], []>} : vector<64x8xbf16>, vector<8x128xbf16>, vector<64x128xf32> -> vector<64x128xf32>
    %32 = arith.addf %27, %31 : vector<64x128xf32>
    %c0_33 = arith.constant 0 : index
    %c0_34 = arith.constant 0 : index
    %33 = vector.load %arg8[%c0_33, %c0_34] : memref<1x128xf32, #tpu.memory_space<vmem>>, vector<1x128xf32>
    %34 = vector.broadcast %33 : vector<1x128xf32> to vector<64x128xf32>
    %35 = arith.addf %32, %34 : vector<64x128xf32>
    %cst_35 = arith.constant 0.000000e+00 : f32
    %36 = vector.broadcast %cst_35 : f32 to vector<64x128xf32>
    %37 = arith.maximumf %35, %36 : vector<64x128xf32>
    %c0_36 = arith.constant 0 : index
    %c0_37 = arith.constant 0 : index
    %c0_38 = arith.constant 0 : index
    %38 = vector.load %arg9[%c0_36, %c0_37, %c0_38] : memref<1x64x128xf32, #tpu.memory_space<vmem>>, vector<1x64x128xf32>
    %39 = vector.shape_cast %38 : vector<1x64x128xf32> to vector<64x128xf32>
    %40 = vector.shape_cast %37 : vector<64x128xf32> to vector<1x64x128xf32>
    tpu.vector_store %arg9[%c0_36, %c0_37, %c0_38], %40 {strides = array<i32>} : memref<1x64x128xf32, #tpu.memory_space<vmem>>, vector<1x64x128xf32>,
    return
  }
  func.func @transform_0(%arg0: i32) -> (i32, i32, i32, i32) {
    %c0_i32 = arith.constant 0 : i32
    %c0_i32_0 = arith.constant 0 : i32
    %c0_i32_1 = arith.constant 0 : i32
    %c0_i32_2 = arith.constant 0 : i32
    return %arg0, %c0_i32, %c0_i32_0, %c0_i32_1 : i32, i32, i32, i32
  }
  func.func @transform_1(%arg0: i32) -> (i32, i32, i32) {
    %c0_i32 = arith.constant 0 : i32
    %c0_i32_0 = arith.constant 0 : i32
    %c0_i32_1 = arith.constant 0 : i32
    return %arg0, %c0_i32, %c0_i32_0 : i32, i32, i32
  }
  func.func @transform_2(%arg0: i32) -> (i32, i32, i32) {
    %c0_i32 = arith.constant 0 : i32
    %c0_i32_0 = arith.constant 0 : i32
    %c0_i32_1 = arith.constant 0 : i32
    %c0_i32_2 = arith.constant 0 : i32
    return %c0_i32, %c0_i32_0, %c0_i32_1 : i32, i32, i32
  }
  func.func @transform_3(%arg0: i32) -> (i32, i32) {
    %c0_i32 = arith.constant 0 : i32
    %c0_i32_0 = arith.constant 0 : i32
    %c0_i32_1 = arith.constant 0 : i32
    return %c0_i32, %c0_i32_0 : i32, i32
  }
  func.func @transform_4(%arg0: i32) -> (i32, i32) {
    %c0_i32 = arith.constant 0 : i32
    %c0_i32_0 = arith.constant 0 : i32
    %c0_i32_1 = arith.constant 0 : i32
    return %c0_i32, %c0_i32_0 : i32, i32
  }
  func.func @transform_5(%arg0: i32) -> (i32, i32) {
    %c0_i32 = arith.constant 0 : i32
    %c0_i32_0 = arith.constant 0 : i32
    %c0_i32_1 = arith.constant 0 : i32
    return %c0_i32, %c0_i32_0 : i32, i32
  }
  func.func @transform_6(%arg0: i32) -> (i32, i32) {
    %c0_i32 = arith.constant 0 : i32
    %c0_i32_0 = arith.constant 0 : i32
    %c0_i32_1 = arith.constant 0 : i32
    return %c0_i32, %c0_i32_0 : i32, i32
  }
  func.func @transform_7(%arg0: i32) -> (i32, i32) {
    %c0_i32 = arith.constant 0 : i32
    %c0_i32_0 = arith.constant 0 : i32
    %c0_i32_1 = arith.constant 0 : i32
    return %c0_i32, %c0_i32_0 : i32, i32
  }
  func.func @transform_8(%arg0: i32) -> (i32, i32, i32) {
    %c0_i32 = arith.constant 0 : i32
    %c0_i32_0 = arith.constant 0 : i32
    %c0_i32_1 = arith.constant 0 : i32
    return %arg0, %c0_i32, %c0_i32_0 : i32, i32, i32
  }
}

</mosaic_0001>

<llo_original>
// kernel: _lambda_.2
$region0: #{_lambda_.2}
  #allocation0 [shape = 'u32[]', space=smem, size = 0x4, offset = 0x4, fixed_abs, tag = 'smem constant byte address 0x4 - core index']
  #allocation1 [shape = 'u32[144,128]{1,0:T(1,128)}', space=vmem, size = 0x12000, scoped, tag = 'internal scratch']
  %s0 = inlined_call_operand.vmem [shape: bf16[512,8], index: 0, kind: input, shape index: {}]
  %s1 = inlined_call_operand.vmem [shape: bf16[8,128], index: 1, kind: input, shape index: {}]
  %s2 = inlined_call_operand.vmem [shape: f32[1,128], index: 2, kind: input, shape index: {}]
  %s3 = inlined_call_operand.vmem [shape: bf16[512,128], index: 3, kind: output, shape index: {}]
  %s4 = sld [smem:[#allocation0]]
  $region22: #{_lambda_.2} parent=0
    _
  %s6 = ssub.s32 1, %s4
  %s7 = scalar_select 0, %s6, %s4
  // Predicated region
  $region2: #{_lambda_.2} parent=0 // pred_check
    _
  $region3: #{_lambda_.2} parent=0 // pred_check_branch
    %9 = sbr.rel (0) target = $region5
  $region4: #{_lambda_.2} parent=0 // pred_region
    _
  $region5: #{_lambda_.2} parent=0 // pred_fallthru
    _
  // Predicated region
  $region6: #{_lambda_.2} parent=0 // pred_check
    _
  $region7: #{_lambda_.2} parent=0 // pred_check_branch
    %11 = sbr.rel (0) target = $region9
  $region8: #{_lambda_.2} parent=0 // pred_region
    _
  $region9: #{_lambda_.2} parent=0 // pred_fallthru
    _
  // Predicated region
  $region10: #{_lambda_.2} parent=0 // pred_check
    _
  $region11: #{_lambda_.2} parent=0 // pred_check_branch
    %13 = sbr.rel (0) target = $region13
  $region12: #{_lambda_.2} parent=0 // pred_region
    _
  $region13: #{_lambda_.2} parent=0 // pred_fallthru
    _
  %v15 = vld [vmem:[%s0] sm:$0xf]
  %v16 = vld [vmem:[%s0 + $0x4] sm:$0xf]
  %v17 = vld [vmem:[%s0 + $0x8] sm:$0xf]
  %v18 = vld [vmem:[%s0 + $0xc] sm:$0xf]
  %v19 = vld [vmem:[%s0 + $0x10] sm:$0xf]
  %v20 = vld [vmem:[%s0 + $0x14] sm:$0xf]
  %v21 = vld [vmem:[%s0 + $0x18] sm:$0xf]
  %v22 = vld [vmem:[%s0 + $0x1c] sm:$0xf]
  %v23 = vld [vmem:[%s0 + $0x20] sm:$0xf]
  %v24 = vld [vmem:[%s0 + $0x24] sm:$0xf]
  %v25 = vld [vmem:[%s0 + $0x28] sm:$0xf]
  %v26 = vld [vmem:[%s0 + $0x2c] sm:$0xf]
  %v27 = vld [vmem:[%s0 + $0x30] sm:$0xf]
  %v28 = vld [vmem:[%s0 + $0x34] sm:$0xf]
  %v29 = vld [vmem:[%s0 + $0x38] sm:$0xf]
  %v30 = vld [vmem:[%s0 + $0x3c] sm:$0xf]
  %v31 = vld [vmem:[%s0 + $0x40] sm:$0xf]
  %v32 = vld [vmem:[%s0 + $0x44] sm:$0xf]
  %v33 = vld [vmem:[%s0 + $0x48] sm:$0xf]
  %v34 = vld [vmem:[%s0 + $0x4c] sm:$0xf]
  %v35 = vld [vmem:[%s0 + $0x50] sm:$0xf]
  %v36 = vld [vmem:[%s0 + $0x54] sm:$0xf]
  %v37 = vld [vmem:[%s0 + $0x58] sm:$0xf]
  %v38 = vld [vmem:[%s0 + $0x5c] sm:$0xf]
  %v39 = vld [vmem:[%s0 + $0x60] sm:$0xf]
  %v40 = vld [vmem:[%s0 + $0x64] sm:$0xf]
  %v41 = vld [vmem:[%s0 + $0x68] sm:$0xf]
  %v42 = vld [vmem:[%s0 + $0x6c] sm:$0xf]
  %v43 = vld [vmem:[%s0 + $0x70] sm:$0xf]
  %v44 = vld [vmem:[%s0 + $0x74] sm:$0xf]
  %v45 = vld [vmem:[%s0 + $0x78] sm:$0xf]
  %v46 = vld [vmem:[%s0 + $0x7c] sm:$0xf]
  %v47 = vld [vmem:[%s0 + $0x80] sm:$0xf]
  %v48 = vld [vmem:[%s0 + $0x84] sm:$0xf]
  %v49 = vld [vmem:[%s0 + $0x88] sm:$0xf]
  %v50 = vld [vmem:[%s0 + $0x8c] sm:$0xf]
  %v51 = vld [vmem:[%s0 + $0x90] sm:$0xf]
  %v52 = vld [vmem:[%s0 + $0x94] sm:$0xf]
  %v53 = vld [vmem:[%s0 + $0x98] sm:$0xf]
  %v54 = vld [vmem:[%s0 + $0x9c] sm:$0xf]
  %v55 = vld [vmem:[%s0 + $0xa0] sm:$0xf]
  %v56 = vld [vmem:[%s0 + $0xa4] sm:$0xf]
  %v57 = vld [vmem:[%s0 + $0xa8] sm:$0xf]
  %v58 = vld [vmem:[%s0 + $0xac] sm:$0xf]
  %v59 = vld [vmem:[%s0 + $0xb0] sm:$0xf]
  %v60 = vld [vmem:[%s0 + $0xb4] sm:$0xf]
  %v61 = vld [vmem:[%s0 + $0xb8] sm:$0xf]
  %v62 = vld [vmem:[%s0 + $0xbc] sm:$0xf]
  %v63 = vld [vmem:[%s0 + $0xc0] sm:$0xf]
  %v64 = vld [vmem:[%s0 + $0xc4] sm:$0xf]
  %v65 = vld [vmem:[%s0 + $0xc8] sm:$0xf]
  %v66 = vld [vmem:[%s0 + $0xcc] sm:$0xf]
  %v67 = vld [vmem:[%s0 + $0xd0] sm:$0xf]
  %v68 = vld [vmem:[%s0 + $0xd4] sm:$0xf]
  %v69 = vld [vmem:[%s0 + $0xd8] sm:$0xf]
  %v70 = vld [vmem:[%s0 + $0xdc] sm:$0xf]
  %v71 = vld [vmem:[%s0 + $0xe0] sm:$0xf]
  %v72 = vld [vmem:[%s0 + $0xe4] sm:$0xf]
  %v73 = vld [vmem:[%s0 + $0xe8] sm:$0xf]
  %v74 = vld [vmem:[%s0 + $0xec] sm:$0xf]
  %v75 = vld [vmem:[%s0 + $0xf0] sm:$0xf]
  %v76 = vld [vmem:[%s0 + $0xf4] sm:$0xf]
  %v77 = vld [vmem:[%s0 + $0xf8] sm:$0xf]
  %v78 = vld [vmem:[%s0 + $0xfc] sm:$0xf]
  %v79 = vld [vmem:[%s1] sm:$0xf]
  %v80 = vld [vmem:[%s2] sm:$0x1]
  %v82 = vlaneseq
  %v83 = vshrl.u32 %v82, 7
  %v84 = vsub.s32 0, %v83
  %v85 = vrot.slane %v80, %v84
  %v151 = vunpack.c.l.b16 %v15
  %v152 = vunpack.c.l.b16 %v16
  %v153 = vunpack.c.l.b16 %v17
  %v154 = vunpack.c.l.b16 %v18
  %v155 = vunpack.c.l.b16 %v19
  %v156 = vunpack.c.l.b16 %v20
  %v157 = vunpack.c.l.b16 %v21
  %v158 = vunpack.c.l.b16 %v22
  %v159 = vunpack.c.l.b16 %v23
  %v160 = vunpack.c.l.b16 %v24
  %v161 = vunpack.c.l.b16 %v25
  %v162 = vunpack.c.l.b16 %v26
  %v163 = vunpack.c.l.b16 %v27
  %v164 = vunpack.c.l.b16 %v28
  %v165 = vunpack.c.l.b16 %v29
  %v166 = vunpack.c.l.b16 %v30
  %v167 = vunpack.c.l.b16 %v31
  %v168 = vunpack.c.l.b16 %v32
  %v169 = vunpack.c.l.b16 %v33
  %v170 = vunpack.c.l.b16 %v34
  %v171 = vunpack.c.l.b16 %v35
  %v172 = vunpack.c.l.b16 %v36
  %v173 = vunpack.c.l.b16 %v37
  %v174 = vunpack.c.l.b16 %v38
  %v175 = vunpack.c.l.b16 %v39
  %v176 = vunpack.c.l.b16 %v40
  %v177 = vunpack.c.l.b16 %v41
  %v178 = vunpack.c.l.b16 %v42
  %v179 = vunpack.c.l.b16 %v43
  %v180 = vunpack.c.l.b16 %v44
  %v181 = vunpack.c.l.b16 %v45
  %v182 = vunpack.c.l.b16 %v46
  %v183 = vunpack.c.l.b16 %v47
  %v184 = vunpack.c.l.b16 %v48
  %v185 = vunpack.c.l.b16 %v49
  %v186 = vunpack.c.l.b16 %v50
  %v187 = vunpack.c.l.b16 %v51
  %v188 = vunpack.c.l.b16 %v52
  %v189 = vunpack.c.l.b16 %v53
  %v190 = vunpack.c.l.b16 %v54
  %v191 = vunpack.c.l.b16 %v55
  %v192 = vunpack.c.l.b16 %v56
  %v193 = vunpack.c.l.b16 %v57
  %v194 = vunpack.c.l.b16 %v58
  %v195 = vunpack.c.l.b16 %v59
  %v196 = vunpack.c.l.b16 %v60
  %v197 = vunpack.c.l.b16 %v61
  %v198 = vunpack.c.l.b16 %v62
  %v199 = vunpack.c.l.b16 %v63
  %v200 = vunpack.c.l.b16 %v64
  %v201 = vunpack.c.l.b16 %v65
  %v202 = vunpack.c.l.b16 %v66
  %v203 = vunpack.c.l.b16 %v67
  %v204 = vunpack.c.l.b16 %v68
  %v205 = vunpack.c.l.b16 %v69
  %v206 = vunpack.c.l.b16 %v70
  %v207 = vunpack.c.l.b16 %v71
  %v208 = vunpack.c.l.b16 %v72
  %v209 = vunpack.c.l.b16 %v73
  %v210 = vunpack.c.l.b16 %v74
  %v211 = vunpack.c.l.b16 %v75
  %v212 = vunpack.c.l.b16 %v76
  %v213 = vunpack.c.l.b16 %v77
  %v214 = vunpack.c.l.b16 %v78
  %v215 = vpack.c.b16 %v152, %v151
  %v216 = vpack.c.b16 %v154, %v153
  %v217 = vpack.c.b16 %v156, %v155
  %v218 = vpack.c.b16 %v158, %v157
  %v219 = vpack.c.b16 %v160, %v159
  %v220 = vpack.c.b16 %v162, %v161
  %v221 = vpack.c.b16 %v164, %v163
  %v222 = vpack.c.b16 %v166, %v165
  %v223 = vpack.c.b16 %v168, %v167
  %v224 = vpack.c.b16 %v170, %v169
  %v225 = vpack.c.b16 %v172, %v171
  %v226 = vpack.c.b16 %v174, %v173
  %v227 = vpack.c.b16 %v176, %v175
  %v228 = vpack.c.b16 %v178, %v177
  %v229 = vpack.c.b16 %v180, %v179
  %v230 = vpack.c.b16 %v182, %v181
  %v231 = vpack.c.b16 %v184, %v183
  %v232 = vpack.c.b16 %v186, %v185
  %v233 = vpack.c.b16 %v188, %v187
  %v234 = vpack.c.b16 %v190, %v189
  %v235 = vpack.c.b16 %v192, %v191
  %v236 = vpack.c.b16 %v194, %v193
  %v237 = vpack.c.b16 %v196, %v195
  %v238 = vpack.c.b16 %v198, %v197
  %v239 = vpack.c.b16 %v200, %v199
  %v240 = vpack.c.b16 %v202, %v201
  %v241 = vpack.c.b16 %v204, %v203
  %v242 = vpack.c.b16 %v206, %v205
  %v243 = vpack.c.b16 %v208, %v207
  %v244 = vpack.c.b16 %v210, %v209
  %v245 = vpack.c.b16 %v212, %v211
  %v246 = vpack.c.b16 %v214, %v213
  %vm247 = vcmask 64512
  %v249 = vsel %vm247, %v215, 0
  %v252 = vsel %vm247, %v216, 0
  %v255 = vsel %vm247, %v217, 0
  %v258 = vsel %vm247, %v218, 0
  %v261 = vsel %vm247, %v219, 0
  %v264 = vsel %vm247, %v220, 0
  %v267 = vsel %vm247, %v221, 0
  %v270 = vsel %vm247, %v222, 0
  %v273 = vsel %vm247, %v223, 0
  %v276 = vsel %vm247, %v224, 0
  %v279 = vsel %vm247, %v225, 0
  %v282 = vsel %vm247, %v226, 0
  %v285 = vsel %vm247, %v227, 0
  %v288 = vsel %vm247, %v228, 0
  %v291 = vsel %vm247, %v229, 0
  %v294 = vsel %vm247, %v230, 0
  %v297 = vsel %vm247, %v231, 0
  %v300 = vsel %vm247, %v232, 0
  %v303 = vsel %vm247, %v233, 0
  %v306 = vsel %vm247, %v234, 0
  %v309 = vsel %vm247, %v235, 0
  %v312 = vsel %vm247, %v236, 0
  %v315 = vsel %vm247, %v237, 0
  %v318 = vsel %vm247, %v238, 0
  %v321 = vsel %vm247, %v239, 0
  %v324 = vsel %vm247, %v240, 0
  %v327 = vsel %vm247, %v241, 0
  %v330 = vsel %vm247, %v242, 0
  %v333 = vsel %vm247, %v243, 0
  %v336 = vsel %vm247, %v244, 0
  %v339 = vsel %vm247, %v245, 0
  %v342 = vsel %vm247, %v246, 0
  %vm344 = vcmask 1043456
  %v346 = vsel %vm344, %v79, 0
  %348 = vmatprep.subr.bf16.mxu0 0
  %349 = vmatpush1.bf16.msra.mxu0 0
  %350 = vmatprep.subr.bf16.mxu0 0
  %351 = vmatpush1.bf16.msra.mxu0 0
  %352 = vmatprep.subr.bf16.mxu0 0
  %353 = vmatpush1.bf16.msra.mxu0 0
  %354 = vmatprep.subr.bf16.mxu0 0
  %355 = vmatpush1.bf16.msra.mxu0 0
  %356 = vmatprep.subr.bf16.mxu0 0
  %357 = vmatpush1.bf16.msra.mxu0 0
  %358 = vmatprep.subr.bf16.mxu0 0
  %359 = vmatpush1.bf16.msra.mxu0 0
  %360 = vmatprep.subr.bf16.mxu0 0
  %361 = vmatpush1.bf16.msra.mxu0 0
  %362 = vmatprep.subr.bf16.mxu0 0
  %363 = vmatpush1.bf16.msra.mxu0 %v346
  %364 = vmatprep.subr.bf16.mxu0 0
  %365 = vmatpush2.bf16.msra.mxu0 0
  %366 = vmatprep.subr.bf16.mxu0 0
  %367 = vmatpush2.bf16.msra.mxu0 0
  %368 = vmatprep.subr.bf16.mxu0 0
  %369 = vmatpush2.bf16.msra.mxu0 0
  %370 = vmatprep.subr.bf16.mxu0 0
  %371 = vmatpush2.bf16.msra.mxu0 0
  %372 = vmatprep.subr.bf16.mxu0 0
  %373 = vmatpush2.bf16.msra.mxu0 0
  %374 = vmatprep.subr.bf16.mxu0 0
  %375 = vmatpush2.bf16.msra.mxu0 0
  %376 = vmatprep.subr.bf16.mxu0 0
  %377 = vmatpush2.bf16.msra.mxu0 0
  %378 = vmatprep.subr.bf16.mxu0 0
  %379 = vmatpush2.bf16.msra.mxu0 0
  %380 = vmatprep.mubr.bf16.mxu0 0
  %381 = vmatmul.mubr.bf16.gmra.mxu0 %v249
  %v382 = vpop.f32.mrf.mxu0
  %v383 = vadd.f32 %v85, %v382
  %v384 = vpop.f32.mrf.mxu0
  %v385 = vpop.f32.mrf.mxu0
  %v386 = vadd.f32 %v85, %v385
  %v387 = vpop.f32.mrf.mxu0
  %388 = vmatprep.mubr.bf16.mxu0 0
  %389 = vmatmul.mubr.bf16.gmra.mxu0 %v252
  %v390 = vpop.f32.mrf.mxu0
  %v391 = vadd.f32 %v85, %v390
  %v392 = vpop.f32.mrf.mxu0
  %v393 = vpop.f32.mrf.mxu0
  %v394 = vadd.f32 %v85, %v393
  %v395 = vpop.f32.mrf.mxu0
  %396 = vmatprep.mubr.bf16.mxu0 0
  %397 = vmatmul.mubr.bf16.gmra.mxu0 %v255
  %v398 = vpop.f32.mrf.mxu0
  %v399 = vadd.f32 %v85, %v398
  %v400 = vpop.f32.mrf.mxu0
  %v401 = vpop.f32.mrf.mxu0
  %v402 = vadd.f32 %v85, %v401
  %v403 = vpop.f32.mrf.mxu0
  %404 = vmatprep.mubr.bf16.mxu0 0
  %405 = vmatmul.mubr.bf16.gmra.mxu0 %v258
  %v406 = vpop.f32.mrf.mxu0
  %v407 = vadd.f32 %v85, %v406
  %v408 = vpop.f32.mrf.mxu0
  %v409 = vpop.f32.mrf.mxu0
  %v410 = vadd.f32 %v85, %v409
  %v411 = vpop.f32.mrf.mxu0
  %412 = vmatprep.mubr.bf16.mxu0 0
  %413 = vmatmul.mubr.bf16.gmra.mxu0 %v261
  %v414 = vpop.f32.mrf.mxu0
  %v415 = vadd.f32 %v85, %v414
  %v416 = vpop.f32.mrf.mxu0
  %v417 = vpop.f32.mrf.mxu0
  %v418 = vadd.f32 %v85, %v417
  %v419 = vpop.f32.mrf.mxu0
  %420 = vmatprep.mubr.bf16.mxu0 0
  %421 = vmatmul.mubr.bf16.gmra.mxu0 %v264
  %v422 = vpop.f32.mrf.mxu0
  %v423 = vadd.f32 %v85, %v422
  %v424 = vpop.f32.mrf.mxu0
  %v425 = vpop.f32.mrf.mxu0
  %v426 = vadd.f32 %v85, %v425
  %v427 = vpop.f32.mrf.mxu0
  %428 = vmatprep.mubr.bf16.mxu0 0
  %429 = vmatmul.mubr.bf16.gmra.mxu0 %v267
  %v430 = vpop.f32.mrf.mxu0
  %v431 = vadd.f32 %v85, %v430
  %v432 = vpop.f32.mrf.mxu0
  %v433 = vpop.f32.mrf.mxu0
  %v434 = vadd.f32 %v85, %v433
  %v435 = vpop.f32.mrf.mxu0
  %436 = vmatprep.mubr.bf16.mxu0 0
  %437 = vmatmul.mubr.bf16.gmra.mxu0 %v270
  %v438 = vpop.f32.mrf.mxu0
  %v439 = vadd.f32 %v85, %v438
  %v440 = vpop.f32.mrf.mxu0
  %v441 = vpop.f32.mrf.mxu0
  %v442 = vadd.f32 %v85, %v441
  %v443 = vpop.f32.mrf.mxu0
  %444 = vmatprep.mubr.bf16.mxu0 0
  %445 = vmatmul.mubr.bf16.gmra.mxu0 %v273
  %v446 = vpop.f32.mrf.mxu0
  %v447 = vadd.f32 %v85, %v446
  %v448 = vpop.f32.mrf.mxu0
  %v449 = vpop.f32.mrf.mxu0
  %v450 = vadd.f32 %v85, %v449
  %v451 = vpop.f32.mrf.mxu0
  %452 = vmatprep.mubr.bf16.mxu0 0
  %453 = vmatmul.mubr.bf16.gmra.mxu0 %v276
  %v454 = vpop.f32.mrf.mxu0
  %v455 = vadd.f32 %v85, %v454
  %v456 = vpop.f32.mrf.mxu0
  %v457 = vpop.f32.mrf.mxu0
  %v458 = vadd.f32 %v85, %v457
  %v459 = vpop.f32.mrf.mxu0
  %460 = vmatprep.mubr.bf16.mxu0 0
  %461 = vmatmul.mubr.bf16.gmra.mxu0 %v279
  %v462 = vpop.f32.mrf.mxu0
  %v463 = vadd.f32 %v85, %v462
  %v464 = vpop.f32.mrf.mxu0
  %v465 = vpop.f32.mrf.mxu0
  %v466 = vadd.f32 %v85, %v465
  %v467 = vpop.f32.mrf.mxu0
  %468 = vmatprep.mubr.bf16.mxu0 0
  %469 = vmatmul.mubr.bf16.gmra.mxu0 %v282
  %v470 = vpop.f32.mrf.mxu0
  %v471 = vadd.f32 %v85, %v470
  %v472 = vpop.f32.mrf.mxu0
  %v473 = vpop.f32.mrf.mxu0
  %v474 = vadd.f32 %v85, %v473
  %v475 = vpop.f32.mrf.mxu0
  %476 = vmatprep.mubr.bf16.mxu0 0
  %477 = vmatmul.mubr.bf16.gmra.mxu0 %v285
  %v478 = vpop.f32.mrf.mxu0
  %v479 = vadd.f32 %v85, %v478
  %v480 = vpop.f32.mrf.mxu0
  %v481 = vpop.f32.mrf.mxu0
  %v482 = vadd.f32 %v85, %v481
  %v483 = vpop.f32.mrf.mxu0
  %484 = vmatprep.mubr.bf16.mxu0 0
  %485 = vmatmul.mubr.bf16.gmra.mxu0 %v288
  %v486 = vpop.f32.mrf.mxu0
  %v487 = vadd.f32 %v85, %v486
  %v488 = vpop.f32.mrf.mxu0
  %v489 = vpop.f32.mrf.mxu0
  %v490 = vadd.f32 %v85, %v489
  %v491 = vpop.f32.mrf.mxu0
  %492 = vmatprep.mubr.bf16.mxu0 0
  %493 = vmatmul.mubr.bf16.gmra.mxu0 %v291
  %v494 = vpop.f32.mrf.mxu0
  %v495 = vadd.f32 %v85, %v494
  %v496 = vpop.f32.mrf.mxu0
  %v497 = vpop.f32.mrf.mxu0
  %v498 = vadd.f32 %v85, %v497
  %v499 = vpop.f32.mrf.mxu0
  %500 = vmatprep.mubr.bf16.mxu0 0
  %501 = vmatmul.mubr.bf16.gmra.mxu0 %v294
  %v502 = vpop.f32.mrf.mxu0
  %v503 = vadd.f32 %v85, %v502
  %v504 = vpop.f32.mrf.mxu0
  %v505 = vpop.f32.mrf.mxu0
  %v506 = vadd.f32 %v85, %v505
  %v507 = vpop.f32.mrf.mxu0
  %508 = vmatprep.mubr.bf16.mxu0 0
  %509 = vmatmul.mubr.bf16.gmra.mxu0 %v297
  %v510 = vpop.f32.mrf.mxu0
  %v511 = vadd.f32 %v85, %v510
  %v512 = vpop.f32.mrf.mxu0
  %v513 = vpop.f32.mrf.mxu0
  %v514 = vadd.f32 %v85, %v513
  %v515 = vpop.f32.mrf.mxu0
  %516 = vmatprep.mubr.bf16.mxu0 0
  %517 = vmatmul.mubr.bf16.gmra.mxu0 %v300
  %v518 = vpop.f32.mrf.mxu0
  %v519 = vadd.f32 %v85, %v518
  %v520 = vpop.f32.mrf.mxu0
  %v521 = vpop.f32.mrf.mxu0
  %v522 = vadd.f32 %v85, %v521
  %v523 = vpop.f32.mrf.mxu0
  %524 = vmatprep.mubr.bf16.mxu0 0
  %525 = vmatmul.mubr.bf16.gmra.mxu0 %v303
  %v526 = vpop.f32.mrf.mxu0
  %v527 = vadd.f32 %v85, %v526
  %v528 = vpop.f32.mrf.mxu0
  %v529 = vpop.f32.mrf.mxu0
  %v530 = vadd.f32 %v85, %v529
  %v531 = vpop.f32.mrf.mxu0
  %532 = vmatprep.mubr.bf16.mxu0 0
  %533 = vmatmul.mubr.bf16.gmra.mxu0 %v306
  %v534 = vpop.f32.mrf.mxu0
  %v535 = vadd.f32 %v85, %v534
  %v536 = vpop.f32.mrf.mxu0
  %v537 = vpop.f32.mrf.mxu0
  %v538 = vadd.f32 %v85, %v537
  %v539 = vpop.f32.mrf.mxu0
  %540 = vmatprep.mubr.bf16.mxu0 0
  %541 = vmatmul.mubr.bf16.gmra.mxu0 %v309
  %v542 = vpop.f32.mrf.mxu0
  %v543 = vadd.f32 %v85, %v542
  %v544 = vpop.f32.mrf.mxu0
  %v545 = vpop.f32.mrf.mxu0
  %v546 = vadd.f32 %v85, %v545
  %v547 = vpop.f32.mrf.mxu0
  %548 = vmatprep.mubr.bf16.mxu0 0
  %549 = vmatmul.mubr.bf16.gmra.mxu0 %v312
  %v550 = vpop.f32.mrf.mxu0
  %v551 = vadd.f32 %v85, %v550
  %v552 = vpop.f32.mrf.mxu0
  %v553 = vpop.f32.mrf.mxu0
  %v554 = vadd.f32 %v85, %v553
  %v555 = vpop.f32.mrf.mxu0
  %556 = vmatprep.mubr.bf16.mxu0 0
  %557 = vmatmul.mubr.bf16.gmra.mxu0 %v315
  %v558 = vpop.f32.mrf.mxu0
  %v559 = vadd.f32 %v85, %v558
  %v560 = vpop.f32.mrf.mxu0
  %v561 = vpop.f32.mrf.mxu0
  %v562 = vadd.f32 %v85, %v561
  %v563 = vpop.f32.mrf.mxu0
  %564 = vmatprep.mubr.bf16.mxu0 0
  %565 = vmatmul.mubr.bf16.gmra.mxu0 %v318
  %v566 = vpop.f32.mrf.mxu0
  %v567 = vadd.f32 %v85, %v566
  %v568 = vpop.f32.mrf.mxu0
  %v569 = vpop.f32.mrf.mxu0
  %v570 = vadd.f32 %v85, %v569
  %v571 = vpop.f32.mrf.mxu0
  %572 = vmatprep.mubr.bf16.mxu0 0
  %573 = vmatmul.mubr.bf16.gmra.mxu0 %v321
  %v574 = vpop.f32.mrf.mxu0
  %v575 = vadd.f32 %v85, %v574
  %v576 = vpop.f32.mrf.mxu0
  %v577 = vpop.f32.mrf.mxu0
  %v578 = vadd.f32 %v85, %v577
  %v579 = vpop.f32.mrf.mxu0
  %580 = vmatprep.mubr.bf16.mxu0 0
  %581 = vmatmul.mubr.bf16.gmra.mxu0 %v324
  %v582 = vpop.f32.mrf.mxu0
  %v583 = vadd.f32 %v85, %v582
  %v584 = vpop.f32.mrf.mxu0
  %v585 = vpop.f32.mrf.mxu0
  %v586 = vadd.f32 %v85, %v585
  %v587 = vpop.f32.mrf.mxu0
  %588 = vmatprep.mubr.bf16.mxu0 0
  %589 = vmatmul.mubr.bf16.gmra.mxu0 %v327
  %v590 = vpop.f32.mrf.mxu0
  %v591 = vadd.f32 %v85, %v590
  %v592 = vpop.f32.mrf.mxu0
  %v593 = vpop.f32.mrf.mxu0
  %v594 = vadd.f32 %v85, %v593
  %v595 = vpop.f32.mrf.mxu0
  %596 = vmatprep.mubr.bf16.mxu0 0
  %597 = vmatmul.mubr.bf16.gmra.mxu0 %v330
  %v598 = vpop.f32.mrf.mxu0
  %v599 = vadd.f32 %v85, %v598
  %v600 = vpop.f32.mrf.mxu0
  %v601 = vpop.f32.mrf.mxu0
  %v602 = vadd.f32 %v85, %v601
  %v603 = vpop.f32.mrf.mxu0
  %604 = vmatprep.mubr.bf16.mxu0 0
  %605 = vmatmul.mubr.bf16.gmra.mxu0 %v333
  %v606 = vpop.f32.mrf.mxu0
  %v607 = vadd.f32 %v85, %v606
  %v608 = vpop.f32.mrf.mxu0
  %v609 = vpop.f32.mrf.mxu0
  %v610 = vadd.f32 %v85, %v609
  %v611 = vpop.f32.mrf.mxu0
  %612 = vmatprep.mubr.bf16.mxu0 0
  %613 = vmatmul.mubr.bf16.gmra.mxu0 %v336
  %v614 = vpop.f32.mrf.mxu0
  %v615 = vadd.f32 %v85, %v614
  %v616 = vpop.f32.mrf.mxu0
  %v617 = vpop.f32.mrf.mxu0
  %v618 = vadd.f32 %v85, %v617
  %v619 = vpop.f32.mrf.mxu0
  %620 = vmatprep.mubr.bf16.mxu0 0
  %621 = vmatmul.mubr.bf16.gmra.mxu0 %v339
  %v622 = vpop.f32.mrf.mxu0
  %v623 = vadd.f32 %v85, %v622
  %v624 = vpop.f32.mrf.mxu0
  %v625 = vpop.f32.mrf.mxu0
  %v626 = vadd.f32 %v85, %v625
  %v627 = vpop.f32.mrf.mxu0
  %628 = vmatprep.mubr.bf16.mxu0 0
  %629 = vmatmul.mubr.bf16.gmra.mxu0 %v342
  %v630 = vpop.f32.mrf.mxu0
  %v631 = vadd.f32 %v85, %v630
  %v632 = vpop.f32.mrf.mxu0
  %v633 = vpop.f32.mrf.mxu0
  %v634 = vadd.f32 %v85, %v633
  %v635 = vpop.f32.mrf.mxu0
  %636 = vdwg.mxu0
  %v637 = vmax.f32 %v383, 0.0
  %v638 = vmax.f32 %v386, 0.0
  %v639 = vmax.f32 %v391, 0.0
  %v640 = vmax.f32 %v394, 0.0
  %v641 = vmax.f32 %v399, 0.0
  %v642 = vmax.f32 %v402, 0.0
  %v643 = vmax.f32 %v407, 0.0
  %v644 = vmax.f32 %v410, 0.0
  %v645 = vmax.f32 %v415, 0.0
  %v646 = vmax.f32 %v418, 0.0
  %v647 = vmax.f32 %v423, 0.0
  %v648 = vmax.f32 %v426, 0.0
  %v649 = vmax.f32 %v431, 0.0
  %v650 = vmax.f32 %v434, 0.0
  %v651 = vmax.f32 %v439, 0.0
  %v652 = vmax.f32 %v442, 0.0
  %v653 = vmax.f32 %v447, 0.0
  %v654 = vmax.f32 %v450, 0.0
  %v655 = vmax.f32 %v455, 0.0
  %v656 = vmax.f32 %v458, 0.0
  %v657 = vmax.f32 %v463, 0.0
  %v658 = vmax.f32 %v466, 0.0
  %v659 = vmax.f32 %v471, 0.0
  %v660 = vmax.f32 %v474, 0.0
  %v661 = vmax.f32 %v479, 0.0
  %v662 = vmax.f32 %v482, 0.0
  %v663 = vmax.f32 %v487, 0.0
  %v664 = vmax.f32 %v490, 0.0
  %v665 = vmax.f32 %v495, 0.0
  %v666 = vmax.f32 %v498, 0.0
  %v667 = vmax.f32 %v503, 0.0
  %v668 = vmax.f32 %v506, 0.0
  %v669 = vmax.f32 %v511, 0.0
  %v670 = vmax.f32 %v514, 0.0
  %v671 = vmax.f32 %v519, 0.0
  %v672 = vmax.f32 %v522, 0.0
  %v673 = vmax.f32 %v527, 0.0
  %v674 = vmax.f32 %v530, 0.0
  %v675 = vmax.f32 %v535, 0.0
  %v676 = vmax.f32 %v538, 0.0
  %v677 = vmax.f32 %v543, 0.0
  %v678 = vmax.f32 %v546, 0.0
  %v679 = vmax.f32 %v551, 0.0
  %v680 = vmax.f32 %v554, 0.0
  %v681 = vmax.f32 %v559, 0.0
  %v682 = vmax.f32 %v562, 0.0
  %v683 = vmax.f32 %v567, 0.0
  %v684 = vmax.f32 %v570, 0.0
  %v685 = vmax.f32 %v575, 0.0
  %v686 = vmax.f32 %v578, 0.0
  %v687 = vmax.f32 %v583, 0.0
  %v688 = vmax.f32 %v586, 0.0
  %v689 = vmax.f32 %v591, 0.0
  %v690 = vmax.f32 %v594, 0.0
  %v691 = vmax.f32 %v599, 0.0
  %v692 = vmax.f32 %v602, 0.0
  %v693 = vmax.f32 %v607, 0.0
  %v694 = vmax.f32 %v610, 0.0
  %v695 = vmax.f32 %v615, 0.0
  %v696 = vmax.f32 %v618, 0.0
  %v697 = vmax.f32 %v623, 0.0
  %v698 = vmax.f32 %v626, 0.0
  %v699 = vmax.f32 %v631, 0.0
  %v700 = vmax.f32 %v634, 0.0
  %v701 = vpack.c.bf16 %v638, %v637
  %v702 = vpack.c.bf16 %v640, %v639
  %v703 = vpack.c.bf16 %v642, %v641
  %v704 = vpack.c.bf16 %v644, %v643
  %v705 = vpack.c.bf16 %v646, %v645
  %v706 = vpack.c.bf16 %v648, %v647
  %v707 = vpack.c.bf16 %v650, %v649
  %v708 = vpack.c.bf16 %v652, %v651
  %v709 = vpack.c.bf16 %v654, %v653
  %v710 = vpack.c.bf16 %v656, %v655
  %v711 = vpack.c.bf16 %v658, %v657
  %v712 = vpack.c.bf16 %v660, %v659
  %v713 = vpack.c.bf16 %v662, %v661
  %v714 = vpack.c.bf16 %v664, %v663
  %v715 = vpack.c.bf16 %v666, %v665
  %v716 = vpack.c.bf16 %v668, %v667
  %v717 = vpack.c.bf16 %v670, %v669
  %v718 = vpack.c.bf16 %v672, %v671
  %v719 = vpack.c.bf16 %v674, %v673
  %v720 = vpack.c.bf16 %v676, %v675
  %v721 = vpack.c.bf16 %v678, %v677
  %v722 = vpack.c.bf16 %v680, %v679
  %v723 = vpack.c.bf16 %v682, %v681
  %v724 = vpack.c.bf16 %v684, %v683
  %v725 = vpack.c.bf16 %v686, %v685
  %v726 = vpack.c.bf16 %v688, %v687
  %v727 = vpack.c.bf16 %v690, %v689
  %v728 = vpack.c.bf16 %v692, %v691
  %v729 = vpack.c.bf16 %v694, %v693
  %v730 = vpack.c.bf16 %v696, %v695
  %v731 = vpack.c.bf16 %v698, %v697
  %v732 = vpack.c.bf16 %v700, %v699
  %v765 = vunpack.c.l.b16 %v701
  %v766 = vunpack.c.h.b16 %v701
  %v767 = vunpack.c.l.b16 %v702
  %v768 = vunpack.c.h.b16 %v702
  %v769 = vunpack.c.l.b16 %v703
  %v770 = vunpack.c.h.b16 %v703
  %v771 = vunpack.c.l.b16 %v704
  %v772 = vunpack.c.h.b16 %v704
  %v773 = vunpack.c.l.b16 %v705
  %v774 = vunpack.c.h.b16 %v705
  %v775 = vunpack.c.l.b16 %v706
  %v776 = vunpack.c.h.b16 %v706
  %v777 = vunpack.c.l.b16 %v707
  %v778 = vunpack.c.h.b16 %v707
  %v779 = vunpack.c.l.b16 %v708
  %v780 = vunpack.c.h.b16 %v708
  %v781 = vunpack.c.l.b16 %v709
  %v782 = vunpack.c.h.b16 %v709
  %v783 = vunpack.c.l.b16 %v710
  %v784 = vunpack.c.h.b16 %v710
  %v785 = vunpack.c.l.b16 %v711
  %v786 = vunpack.c.h.b16 %v711
  %v787 = vunpack.c.l.b16 %v712
  %v788 = vunpack.c.h.b16 %v712
  %v789 = vunpack.c.l.b16 %v713
  %v790 = vunpack.c.h.b16 %v713
  %v791 = vunpack.c.l.b16 %v714
  %v792 = vunpack.c.h.b16 %v714
  %v793 = vunpack.c.l.b16 %v715
  %v794 = vunpack.c.h.b16 %v715
  %v795 = vunpack.c.l.b16 %v716
  %v796 = vunpack.c.h.b16 %v716
  %v797 = vunpack.c.l.b16 %v717
  %v798 = vunpack.c.h.b16 %v717
  %v799 = vunpack.c.l.b16 %v718
  %v800 = vunpack.c.h.b16 %v718
  %v801 = vunpack.c.l.b16 %v719
  %v802 = vunpack.c.h.b16 %v719
  %v803 = vunpack.c.l.b16 %v720
  %v804 = vunpack.c.h.b16 %v720
  %v805 = vunpack.c.l.b16 %v721
  %v806 = vunpack.c.h.b16 %v721
  %v807 = vunpack.c.l.b16 %v722
  %v808 = vunpack.c.h.b16 %v722
  %v809 = vunpack.c.l.b16 %v723
  %v810 = vunpack.c.h.b16 %v723
  %v811 = vunpack.c.l.b16 %v724
  %v812 = vunpack.c.h.b16 %v724
  %v813 = vunpack.c.l.b16 %v725
  %v814 = vunpack.c.h.b16 %v725
  %v815 = vunpack.c.l.b16 %v726
  %v816 = vunpack.c.h.b16 %v726
  %v817 = vunpack.c.l.b16 %v727
  %v818 = vunpack.c.h.b16 %v727
  %v819 = vunpack.c.l.b16 %v728
  %v820 = vunpack.c.h.b16 %v728
  %v821 = vunpack.c.l.b16 %v729
  %v822 = vunpack.c.h.b16 %v729
  %v823 = vunpack.c.l.b16 %v730
  %v824 = vunpack.c.h.b16 %v730
  %v825 = vunpack.c.l.b16 %v731
  %v826 = vunpack.c.h.b16 %v731
  %v827 = vunpack.c.l.b16 %v732
  %v828 = vunpack.c.h.b16 %v732
  %v829 = vpack.c.b16 %v765, %v765
  %v830 = vpack.c.b16 %v766, %v766
  %v831 = vpack.c.b16 %v767, %v767
  %v832 = vpack.c.b16 %v768, %v768
  %v833 = vpack.c.b16 %v769, %v769
  %v834 = vpack.c.b16 %v770, %v770
  %v835 = vpack.c.b16 %v771, %v771
  %v836 = vpack.c.b16 %v772, %v772
  %v837 = vpack.c.b16 %v773, %v773
  %v838 = vpack.c.b16 %v774, %v774
  %v839 = vpack.c.b16 %v775, %v775
  %v840 = vpack.c.b16 %v776, %v776
  %v841 = vpack.c.b16 %v777, %v777
  %v842 = vpack.c.b16 %v778, %v778
  %v843 = vpack.c.b16 %v779, %v779
  %v844 = vpack.c.b16 %v780, %v780
  %v845 = vpack.c.b16 %v781, %v781
  %v846 = vpack.c.b16 %v782, %v782
  %v847 = vpack.c.b16 %v783, %v783
  %v848 = vpack.c.b16 %v784, %v784
  %v849 = vpack.c.b16 %v785, %v785
  %v850 = vpack.c.b16 %v786, %v786
  %v851 = vpack.c.b16 %v787, %v787
  %v852 = vpack.c.b16 %v788, %v788
  %v853 = vpack.c.b16 %v789, %v789
  %v854 = vpack.c.b16 %v790, %v790
  %v855 = vpack.c.b16 %v791, %v791
  %v856 = vpack.c.b16 %v792, %v792
  %v857 = vpack.c.b16 %v793, %v793
  %v858 = vpack.c.b16 %v794, %v794
  %v859 = vpack.c.b16 %v795, %v795
  %v860 = vpack.c.b16 %v796, %v796
  %v861 = vpack.c.b16 %v797, %v797
  %v862 = vpack.c.b16 %v798, %v798
  %v863 = vpack.c.b16 %v799, %v799
  %v864 = vpack.c.b16 %v800, %v800
  %v865 = vpack.c.b16 %v801, %v801
  %v866 = vpack.c.b16 %v802, %v802
  %v867 = vpack.c.b16 %v803, %v803
  %v868 = vpack.c.b16 %v804, %v804
  %v869 = vpack.c.b16 %v805, %v805
  %v870 = vpack.c.b16 %v806, %v806
  %v871 = vpack.c.b16 %v807, %v807
  %v872 = vpack.c.b16 %v808, %v808
  %v873 = vpack.c.b16 %v809, %v809
  %v874 = vpack.c.b16 %v810, %v810
  %v875 = vpack.c.b16 %v811, %v811
  %v876 = vpack.c.b16 %v812, %v812
  %v877 = vpack.c.b16 %v813, %v813
  %v878 = vpack.c.b16 %v814, %v814
  %v879 = vpack.c.b16 %v815, %v815
  %v880 = vpack.c.b16 %v816, %v816
  %v881 = vpack.c.b16 %v817, %v817
  %v882 = vpack.c.b16 %v818, %v818
  %v883 = vpack.c.b16 %v819, %v819
  %v884 = vpack.c.b16 %v820, %v820
  %v885 = vpack.c.b16 %v821, %v821
  %v886 = vpack.c.b16 %v822, %v822
  %v887 = vpack.c.b16 %v823, %v823
  %v888 = vpack.c.b16 %v824, %v824
  %v889 = vpack.c.b16 %v825, %v825
  %v890 = vpack.c.b16 %v826, %v826
  %v891 = vpack.c.b16 %v827, %v827
  %v892 = vpack.c.b16 %v828, %v828
  %957 = vst [vmem:[%s3] sm:$0xf] %v829
  %958 = vst [vmem:[%s3 + $0x4] sm:$0xf] %v830
  %959 = vst [vmem:[%s3 + $0x8] sm:$0xf] %v831
  %960 = vst [vmem:[%s3 + $0xc] sm:$0xf] %v832
  %961 = vst [vmem:[%s3 + $0x10] sm:$0xf] %v833
  %962 = vst [vmem:[%s3 + $0x14] sm:$0xf] %v834
  %963 = vst [vmem:[%s3 + $0x18] sm:$0xf] %v835
  %964 = vst [vmem:[%s3 + $0x1c] sm:$0xf] %v836
  %965 = vst [vmem:[%s3 + $0x20] sm:$0xf] %v837
  %966 = vst [vmem:[%s3 + $0x24] sm:$0xf] %v838
  %967 = vst [vmem:[%s3 + $0x28] sm:$0xf] %v839
  %968 = vst [vmem:[%s3 + $0x2c] sm:$0xf] %v840
  %969 = vst [vmem:[%s3 + $0x30] sm:$0xf] %v841
  %970 = vst [vmem:[%s3 + $0x34] sm:$0xf] %v842
  %971 = vst [vmem:[%s3 + $0x38] sm:$0xf] %v843
  %972 = vst [vmem:[%s3 + $0x3c] sm:$0xf] %v844
  %973 = vst [vmem:[%s3 + $0x40] sm:$0xf] %v845
  %974 = vst [vmem:[%s3 + $0x44] sm:$0xf] %v846
  %975 = vst [vmem:[%s3 + $0x48] sm:$0xf] %v847
  %976 = vst [vmem:[%s3 + $0x4c] sm:$0xf] %v848
  %977 = vst [vmem:[%s3 + $0x50] sm:$0xf] %v849
  %978 = vst [vmem:[%s3 + $0x54] sm:$0xf] %v850
  %979 = vst [vmem:[%s3 + $0x58] sm:$0xf] %v851
  %980 = vst [vmem:[%s3 + $0x5c] sm:$0xf] %v852
  %981 = vst [vmem:[%s3 + $0x60] sm:$0xf] %v853
  %982 = vst [vmem:[%s3 + $0x64] sm:$0xf] %v854
  %983 = vst [vmem:[%s3 + $0x68] sm:$0xf] %v855
  %984 = vst [vmem:[%s3 + $0x6c] sm:$0xf] %v856
  %985 = vst [vmem:[%s3 + $0x70] sm:$0xf] %v857
  %986 = vst [vmem:[%s3 + $0x74] sm:$0xf] %v858
  %987 = vst [vmem:[%s3 + $0x78] sm:$0xf] %v859
  %988 = vst [vmem:[%s3 + $0x7c] sm:$0xf] %v860
  %989 = vst [vmem:[%s3 + $0x80] sm:$0xf] %v861
  %990 = vst [vmem:[%s3 + $0x84] sm:$0xf] %v862
  %991 = vst [vmem:[%s3 + $0x88] sm:$0xf] %v863
  %992 = vst [vmem:[%s3 + $0x8c] sm:$0xf] %v864
  %993 = vst [vmem:[%s3 + $0x90] sm:$0xf] %v865
  %994 = vst [vmem:[%s3 + $0x94] sm:$0xf] %v866
  %995 = vst [vmem:[%s3 + $0x98] sm:$0xf] %v867
  %996 = vst [vmem:[%s3 + $0x9c] sm:$0xf] %v868
  %997 = vst [vmem:[%s3 + $0xa0] sm:$0xf] %v869
  %998 = vst [vmem:[%s3 + $0xa4] sm:$0xf] %v870
  %999 = vst [vmem:[%s3 + $0xa8] sm:$0xf] %v871
  %1000 = vst [vmem:[%s3 + $0xac] sm:$0xf] %v872
  %1001 = vst [vmem:[%s3 + $0xb0] sm:$0xf] %v873
  %1002 = vst [vmem:[%s3 + $0xb4] sm:$0xf] %v874
  %1003 = vst [vmem:[%s3 + $0xb8] sm:$0xf] %v875
  %1004 = vst [vmem:[%s3 + $0xbc] sm:$0xf] %v876
  %1005 = vst [vmem:[%s3 + $0xc0] sm:$0xf] %v877
  %1006 = vst [vmem:[%s3 + $0xc4] sm:$0xf] %v878
  %1007 = vst [vmem:[%s3 + $0xc8] sm:$0xf] %v879
  %1008 = vst [vmem:[%s3 + $0xcc] sm:$0xf] %v880
  %1009 = vst [vmem:[%s3 + $0xd0] sm:$0xf] %v881
  %1010 = vst [vmem:[%s3 + $0xd4] sm:$0xf] %v882
  %1011 = vst [vmem:[%s3 + $0xd8] sm:$0xf] %v883
  %1012 = vst [vmem:[%s3 + $0xdc] sm:$0xf] %v884
  %1013 = vst [vmem:[%s3 + $0xe0] sm:$0xf] %v885
  %1014 = vst [vmem:[%s3 + $0xe4] sm:$0xf] %v886
  %1015 = vst [vmem:[%s3 + $0xe8] sm:$0xf] %v887
  %1016 = vst [vmem:[%s3 + $0xec] sm:$0xf] %v888
  %1017 = vst [vmem:[%s3 + $0xf0] sm:$0xf] %v889
  %1018 = vst [vmem:[%s3 + $0xf4] sm:$0xf] %v890
  %1019 = vst [vmem:[%s3 + $0xf8] sm:$0xf] %v891
  %1020 = vst [vmem:[%s3 + $0xfc] sm:$0xf] %v892
  // Predicated region
  $region14: #{_lambda_.2} parent=0 // pred_check
    _
  $region15: #{_lambda_.2} parent=0 // pred_check_branch
    %1022 = sbr.rel (0) target = $region17
  $region16: #{_lambda_.2} parent=0 // pred_region
    _
  $region17: #{_lambda_.2} parent=0 // pred_fallthru
    _
  // Predicated region
  $region18: #{_lambda_.2} parent=0 // pred_check
    _
  $region19: #{_lambda_.2} parent=0 // pred_check_branch
    %1024 = sbr.rel (0) target = $region21
  $region20: #{_lambda_.2} parent=0 // pred_region
    _
  $region21: #{_lambda_.2} parent=0 // pred_fallthru
    _

// kernel: _lambda_.3
$region0: #{_lambda_.3}
  #allocation0 [shape = 'u32[]', space=smem, size = 0x4, offset = 0x4, fixed_abs, tag = 'smem constant byte address 0x4 - core index']
  #allocation1 [shape = 'u32[144,128]{1,0:T(1,128)}', space=vmem, size = 0x12000, scoped, tag = 'internal scratch']
  %s0 = inlined_call_operand.vmem [shape: bf16[2,2,72,384], index: 0, kind: input, shape index: {}]
  %s1 = inlined_call_operand.vmem [shape: bf16[2,64,8], index: 1, kind: input, shape index: {}]
  %s2 = inlined_call_operand.vmem [shape: bf16[3,384,128], index: 2, kind: input, shape index: {}]
  %s3 = inlined_call_operand.vmem [shape: f32[1,128], index: 3, kind: input, shape index: {}]
  %s4 = inlined_call_operand.vmem [shape: bf16[128,128], index: 4, kind: input, shape index: {}]
  %s5 = inlined_call_operand.vmem [shape: f32[1,128], index: 5, kind: input, shape index: {}]
  %s6 = inlined_call_operand.vmem [shape: bf16[8,128], index: 6, kind: input, shape index: {}]
  %s7 = inlined_call_operand.vmem [shape: f32[1,128], index: 7, kind: input, shape index: {}]
  %s8 = inlined_call_operand.vmem [shape: f32[2,64,128], index: 8, kind: output, shape index: {}]
  %s9 = sld [smem:[#allocation0]]
  $region65: #{_lambda_.3} parent=0
    _
  %s11 = ssub.s32 1, %s9
  %s12 = scalar_select 0, %s11, %s9
  loop: start=0, step=1, limit=4
  $region2: #{_lambda_.3} parent=0 // loop_pre_header
    _
  $region3: #{_lambda_.3} parent=0 // loop_header
    %s14 = sphi 0, %s18
    %p15 = scmp.ge.s32.totalorder %s14, 4
    %s24 = sphi 0, %s26
    %s27 = sphi 0, %s24
    %s28 = sphi 0, %s27
    %s44 = sphi 0, %s28
    %s50 = sphi 0, %s52
    %s53 = sphi 0, %s50
    %s54 = sphi 0, %s53
    %s70 = sphi 0, %s54
    %s74 = sphi 0, %s74
    %s76 = sphi 0, %s74
    %s77 = sphi 0, %s76
    %s91 = sphi 0, %s77
    %s95 = sphi 0, %s95
    %s97 = sphi 0, %s95
    %s98 = sphi 0, %s97
    %s112 = sphi 0, %s98
    %s116 = sphi 0, %s116
    %s118 = sphi 0, %s116
    %s119 = sphi 0, %s118
    %s133 = sphi 0, %s119
    %s137 = sphi 0, %s137
    %s139 = sphi 0, %s137
    %s140 = sphi 0, %s139
    %s154 = sphi 0, %s140
    %s158 = sphi 0, %s158
    %s160 = sphi 0, %s158
    %s161 = sphi 0, %s160
    %s175 = sphi 0, %s161
    %s179 = sphi 0, %s179
    %s181 = sphi 0, %s179
    %s182 = sphi 0, %s181
    %s196 = sphi 0, %s182
    %s202 = sphi 0, %s204
    %s205 = sphi 0, %s202
    %s206 = sphi 0, %s205
    %s222 = sphi 0, %s206
  $region4: #{_lambda_.3} parent=0 // loop_header_branch
    %17 = sbr.rel (%p15) target = $region8
  $region5: #{_lambda_.3} parent=0 // loop_body
    %s19 = ssub.s32 %s14, 1
    %s20 = ssub.s32 %s14, 2
    %s21 = sadd.s32 %s14, 1
    %s22 = ssub.s32 %s14, %s21
    %p23 = scmp.eq.s32.totalorder %s22, 0
    %s25 = sadd.s32 %s24, 1
    %s26 = scalar_select %p23, %s24, %s25
    %p29 = pneg %p23
    %p30 = scmp.eq.s32.totalorder %s14, 1
    %p31 = por %p29, %p30
    %p32 = scmp.ne.s32.totalorder %s24, %s27
    %p33 = scmp.eq.s32.totalorder %s14, 0
    %p34 = por %p32, %p33
    %p35 = scmp.ne.s32.totalorder %s24, %s27
    %p36 = scmp.eq.s32.totalorder %s19, 1
    %p37 = por %p35, %p36
    %p38 = scmp.ne.s32.totalorder %s27, %s28
    %p39 = scmp.eq.s32.totalorder %s19, 0
    %p40 = por %p38, %p39
    %p41 = scmp.ne.s32.totalorder %s27, %s28
    %p42 = scmp.eq.s32.totalorder %s20, 1
    %p43 = por %p41, %p42
    %p45 = scmp.ne.s32.totalorder %s28, %s44
    %p46 = scmp.eq.s32.totalorder %s20, 0
    %p47 = por %p45, %p46
    %s48 = ssub.s32 %s14, %s21
    %p49 = scmp.eq.s32.totalorder %s48, 0
    %s51 = sadd.s32 %s50, 1
    %s52 = scalar_select %p49, %s50, %s51
    %p55 = pneg %p49
    %p56 = scmp.eq.s32.totalorder %s14, 1
    %p57 = por %p55, %p56
    %p58 = scmp.ne.s32.totalorder %s50, %s53
    %p59 = scmp.eq.s32.totalorder %s14, 0
    %p60 = por %p58, %p59
    %p61 = scmp.ne.s32.totalorder %s50, %s53
    %p62 = scmp.eq.s32.totalorder %s19, 1
    %p63 = por %p61, %p62
    %p64 = scmp.ne.s32.totalorder %s53, %s54
    %p65 = scmp.eq.s32.totalorder %s19, 0
    %p66 = por %p64, %p65
    %p67 = scmp.ne.s32.totalorder %s53, %s54
    %p68 = scmp.eq.s32.totalorder %s20, 1
    %p69 = por %p67, %p68
    %p71 = scmp.ne.s32.totalorder %s54, %s70
    %p72 = scmp.eq.s32.totalorder %s20, 0
    %p73 = por %p71, %p72
    %s75 = sadd.s32 %s74, 1
    %p78 = scmp.eq.s32.totalorder %s14, 1
    %p79 = scmp.ne.s32.totalorder %s74, %s76
    %p80 = scmp.eq.s32.totalorder %s14, 0
    %p81 = por %p79, %p80
    %p82 = scmp.ne.s32.totalorder %s74, %s76
    %p83 = scmp.eq.s32.totalorder %s19, 1
    %p84 = por %p82, %p83
    %p85 = scmp.ne.s32.totalorder %s76, %s77
    %p86 = scmp.eq.s32.totalorder %s19, 0
    %p87 = por %p85, %p86
    %p88 = scmp.ne.s32.totalorder %s76, %s77
    %p89 = scmp.eq.s32.totalorder %s20, 1
    %p90 = por %p88, %p89
    %p92 = scmp.ne.s32.totalorder %s77, %s91
    %p93 = scmp.eq.s32.totalorder %s20, 0
    %p94 = por %p92, %p93
    %s96 = sadd.s32 %s95, 1
    %p99 = scmp.eq.s32.totalorder %s14, 1
    %p100 = scmp.ne.s32.totalorder %s95, %s97
    %p101 = scmp.eq.s32.totalorder %s14, 0
    %p102 = por %p100, %p101
    %p103 = scmp.ne.s32.totalorder %s95, %s97
    %p104 = scmp.eq.s32.totalorder %s19, 1
    %p105 = por %p103, %p104
    %p106 = scmp.ne.s32.totalorder %s97, %s98
    %p107 = scmp.eq.s32.totalorder %s19, 0
    %p108 = por %p106, %p107
    %p109 = scmp.ne.s32.totalorder %s97, %s98
    %p110 = scmp.eq.s32.totalorder %s20, 1
    %p111 = por %p109, %p110
    %p113 = scmp.ne.s32.totalorder %s98, %s112
    %p114 = scmp.eq.s32.totalorder %s20, 0
    %p115 = por %p113, %p114
    %s117 = sadd.s32 %s116, 1
    %p120 = scmp.eq.s32.totalorder %s14, 1
    %p121 = scmp.ne.s32.totalorder %s116, %s118
    %p122 = scmp.eq.s32.totalorder %s14, 0
    %p123 = por %p121, %p122
    %p124 = scmp.ne.s32.totalorder %s116, %s118
    %p125 = scmp.eq.s32.totalorder %s19, 1
    %p126 = por %p124, %p125
    %p127 = scmp.ne.s32.totalorder %s118, %s119
    %p128 = scmp.eq.s32.totalorder %s19, 0
    %p129 = por %p127, %p128
    %p130 = scmp.ne.s32.totalorder %s118, %s119
    %p131 = scmp.eq.s32.totalorder %s20, 1
    %p132 = por %p130, %p131
    %p134 = scmp.ne.s32.totalorder %s119, %s133
    %p135 = scmp.eq.s32.totalorder %s20, 0
    %p136 = por %p134, %p135
    %s138 = sadd.s32 %s137, 1
    %p141 = scmp.eq.s32.totalorder %s14, 1
    %p142 = scmp.ne.s32.totalorder %s137, %s139
    %p143 = scmp.eq.s32.totalorder %s14, 0
    %p144 = por %p142, %p143
    %p145 = scmp.ne.s32.totalorder %s137, %s139
    %p146 = scmp.eq.s32.totalorder %s19, 1
    %p147 = por %p145, %p146
    %p148 = scmp.ne.s32.totalorder %s139, %s140
    %p149 = scmp.eq.s32.totalorder %s19, 0
    %p150 = por %p148, %p149
    %p151 = scmp.ne.s32.totalorder %s139, %s140
    %p152 = scmp.eq.s32.totalorder %s20, 1
    %p153 = por %p151, %p152
    %p155 = scmp.ne.s32.totalorder %s140, %s154
    %p156 = scmp.eq.s32.totalorder %s20, 0
    %p157 = por %p155, %p156
    %s159 = sadd.s32 %s158, 1
    %p162 = scmp.eq.s32.totalorder %s14, 1
    %p163 = scmp.ne.s32.totalorder %s158, %s160
    %p164 = scmp.eq.s32.totalorder %s14, 0
    %p165 = por %p163, %p164
    %p166 = scmp.ne.s32.totalorder %s158, %s160
    %p167 = scmp.eq.s32.totalorder %s19, 1
    %p168 = por %p166, %p167
    %p169 = scmp.ne.s32.totalorder %s160, %s161
    %p170 = scmp.eq.s32.totalorder %s19, 0
    %p171 = por %p169, %p170
    %p172 = scmp.ne.s32.totalorder %s160, %s161
    %p173 = scmp.eq.s32.totalorder %s20, 1
    %p174 = por %p172, %p173
    %p176 = scmp.ne.s32.totalorder %s161, %s175
    %p177 = scmp.eq.s32.totalorder %s20, 0
    %p178 = por %p176, %p177
    %s180 = sadd.s32 %s179, 1
    %p183 = scmp.eq.s32.totalorder %s14, 1
    %p184 = scmp.ne.s32.totalorder %s179, %s181
    %p185 = scmp.eq.s32.totalorder %s14, 0
    %p186 = por %p184, %p185
    %p187 = scmp.ne.s32.totalorder %s179, %s181
    %p188 = scmp.eq.s32.totalorder %s19, 1
    %p189 = por %p187, %p188
    %p190 = scmp.ne.s32.totalorder %s181, %s182
    %p191 = scmp.eq.s32.totalorder %s19, 0
    %p192 = por %p190, %p191
    %p193 = scmp.ne.s32.totalorder %s181, %s182
    %p194 = scmp.eq.s32.totalorder %s20, 1
    %p195 = por %p193, %p194
    %p197 = scmp.ne.s32.totalorder %s182, %s196
    %p198 = scmp.eq.s32.totalorder %s20, 0
    %p199 = por %p197, %p198
    %s200 = ssub.s32 %s14, %s21
    %p201 = scmp.eq.s32.totalorder %s200, 0
    %s203 = sadd.s32 %s202, 1
    %s204 = scalar_select %p201, %s202, %s203
    %p207 = pneg %p201
    %p208 = scmp.eq.s32.totalorder %s14, 1
    %p209 = por %p207, %p208
    %p210 = scmp.ne.s32.totalorder %s202, %s205
    %p211 = scmp.eq.s32.totalorder %s14, 0
    %p212 = por %p210, %p211
    %p213 = scmp.ne.s32.totalorder %s202, %s205
    %p214 = scmp.eq.s32.totalorder %s19, 1
    %p215 = por %p213, %p214
    %p216 = scmp.ne.s32.totalorder %s205, %s206
    %p217 = scmp.eq.s32.totalorder %s19, 0
    %p218 = por %p216, %p217
    %p219 = scmp.ne.s32.totalorder %s205, %s206
    %p220 = scmp.eq.s32.totalorder %s20, 1
    %p221 = por %p219, %p220
    %p223 = scmp.ne.s32.totalorder %s206, %s222
    %p224 = scmp.eq.s32.totalorder %s20, 0
    %p225 = por %p223, %p224
    %p226 = scmp.le.s32.totalorder 1, %s14
    %p227 = scmp.lt.s32.totalorder %s14, 3
    %p228 = pnand %p226, %p227
    %p229 = pneg %p228
    // Predicated region
    $region9: #{_lambda_.3} parent=5 // pred_check
      _
    $region10: #{_lambda_.3} parent=5 // pred_check_branch
      %231 = sbr.rel (%p228) target = $region12
    $region11: #{_lambda_.3} parent=5 // pred_region
      %s232 = ssub.s32 %s14, 1
      // Predicated region
      $region13: #{_lambda_.3} parent=11 // pred_check
        %p233 = pneg %p87
      $region14: #{_lambda_.3} parent=11 // pred_check_branch
        %235 = sbr.rel (%p233) target = $region16
      $region15: #{_lambda_.3} parent=11 // pred_region
        _
      $region16: #{_lambda_.3} parent=11 // pred_fallthru
        _
      // Predicated region
      $region17: #{_lambda_.3} parent=11 // pred_check
        %p236 = pneg %p108
      $region18: #{_lambda_.3} parent=11 // pred_check_branch
        %238 = sbr.rel (%p236) target = $region20
      $region19: #{_lambda_.3} parent=11 // pred_region
        _
      $region20: #{_lambda_.3} parent=11 // pred_fallthru
        _
      // Predicated region
      $region21: #{_lambda_.3} parent=11 // pred_check
        %p239 = pneg %p129
      $region22: #{_lambda_.3} parent=11 // pred_check_branch
        %241 = sbr.rel (%p239) target = $region24
      $region23: #{_lambda_.3} parent=11 // pred_region
        _
      $region24: #{_lambda_.3} parent=11 // pred_fallthru
        _
      // Predicated region
      $region25: #{_lambda_.3} parent=11 // pred_check
        %p242 = pneg %p150
      $region26: #{_lambda_.3} parent=11 // pred_check_branch
        %244 = sbr.rel (%p242) target = $region28
      $region27: #{_lambda_.3} parent=11 // pred_region
        _
      $region28: #{_lambda_.3} parent=11 // pred_fallthru
        _
      // Predicated region
      $region29: #{_lambda_.3} parent=11 // pred_check
        %p245 = pneg %p171
      $region30: #{_lambda_.3} parent=11 // pred_check_branch
        %247 = sbr.rel (%p245) target = $region32
      $region31: #{_lambda_.3} parent=11 // pred_region
        _
      $region32: #{_lambda_.3} parent=11 // pred_fallthru
        _
      // Predicated region
      $region33: #{_lambda_.3} parent=11 // pred_check
        %p248 = pneg %p192
      $region34: #{_lambda_.3} parent=11 // pred_check_branch
        %250 = sbr.rel (%p248) target = $region36
      $region35: #{_lambda_.3} parent=11 // pred_region
        _
      $region36: #{_lambda_.3} parent=11 // pred_fallthru
        _
    $region12: #{_lambda_.3} parent=5 // pred_fallthru
      _
    %p251 = scmp.lt.s32.totalorder %s14, 2
    // Predicated region
    $region37: #{_lambda_.3} parent=5 // pred_check
      %p252 = pneg %p251
    $region38: #{_lambda_.3} parent=5 // pred_check_branch
      %254 = sbr.rel (%p252) target = $region40
    $region39: #{_lambda_.3} parent=5 // pred_region
      // Predicated region
      $region41: #{_lambda_.3} parent=39 // pred_check
        %p255 = pneg %p34
      $region42: #{_lambda_.3} parent=39 // pred_check_branch
        %257 = sbr.rel (%p255) target = $region44
      $region43: #{_lambda_.3} parent=39 // pred_region
        %p258 = scmp.lt.s32.totalorder %s14, 1
        %s259 = scalar_select %p258, %s14, 1
        %s260 = smul.addr %s259, 54
        %s261 = smul.addr %s260, 4
        %s262 = scalar_lea.vmem %s0, %s261
      $region44: #{_lambda_.3} parent=39 // pred_fallthru
        _
      // Predicated region
      $region45: #{_lambda_.3} parent=39 // pred_check
        %p263 = pneg %p60
      $region46: #{_lambda_.3} parent=39 // pred_check_branch
        %265 = sbr.rel (%p263) target = $region48
      $region47: #{_lambda_.3} parent=39 // pred_region
        %p266 = scmp.lt.s32.totalorder %s14, 1
        %s267 = scalar_select %p266, %s14, 1
        %s268 = smul.addr %s267, 8
        %s269 = smul.addr %s268, 4
        %s270 = scalar_lea.vmem %s1, %s269
      $region48: #{_lambda_.3} parent=39 // pred_fallthru
        _
    $region40: #{_lambda_.3} parent=5 // pred_fallthru
      _
    %p271 = scmp.le.s32.totalorder 1, %s14
    %p272 = scmp.lt.s32.totalorder %s14, 3
    %p273 = pnand %p271, %p272
    %p274 = pneg %p273
    // Predicated region
    $region49: #{_lambda_.3} parent=5 // pred_check
      _
    $region50: #{_lambda_.3} parent=5 // pred_check_branch
      %276 = sbr.rel (%p273) target = $region52
    $region51: #{_lambda_.3} parent=5 // pred_region
      %s277 = ssub.s32 %s14, 1
      %p278 = scmp.lt.s32.totalorder %s19, 1
      %s279 = scalar_select %p278, %s19, 1
      %s280 = smul.addr %s279, 54
      %s281 = smul.addr %s280, 4
      %s282 = scalar_lea.vmem %s0, %s281
      %p283 = pneg %p40
      %p284 = pneg %p37
      %p285 = scmp.lt.s32.totalorder %s19, 1
      %s286 = scalar_select %p285, %s19, 1
      %s287 = smul.addr %s286, 8
      %s288 = smul.addr %s287, 4
      %s289 = scalar_lea.vmem %s1, %s288
      %p290 = pneg %p66
      %p291 = pneg %p63
      %p292 = pneg %p87
      %p293 = pneg %p84
      %p294 = pneg %p108
      %p295 = pneg %p105
      %p296 = pneg %p129
      %p297 = pneg %p126
      %p298 = pneg %p150
      %p299 = pneg %p147
      %p300 = pneg %p171
      %p301 = pneg %p168
      %p302 = pneg %p192
      %p303 = pneg %p189
      %p304 = pneg %p218
      %p305 = pneg %p215
      %p306 = scmp.lt.s32.totalorder %s19, 1
      %s307 = scalar_select %p306, %s19, 1
      %s308 = smul.addr %s307, 8
      %s309 = smul.addr %s308, 8
      %s310 = scalar_lea.vmem %s8, %s309
      %p311 = scmp.lt.s32.totalorder %s19, 1
      %s312 = scalar_select %p311, %s19, 1
      %s313 = smul.addr %s312, 54
      %s314 = smul.addr %s313, 4
      %s315 = scalar_lea.vmem %s0, %s314
      %p316 = scmp.lt.s32.totalorder %s19, 1
      %s317 = scalar_select %p316, %s19, 1
      %s318 = smul.addr %s317, 8
      %s319 = smul.addr %s318, 4
      %s320 = scalar_lea.vmem %s1, %s319
      %p321 = scmp.lt.s32.totalorder %s19, 1
      %s322 = scalar_select %p321, %s19, 1
      %s323 = smul.addr %s322, 8
      %s324 = smul.addr %s323, 8
      %s325 = scalar_lea.vmem %s8, %s324
      %v327 = vld [vmem:[%s315] sm:$0xff]
      %v328 = vld [vmem:[%s315 + $0x8] sm:$0xf]
      %v329 = vld [vmem:[%s315 + $0xc] sm:$0xff]
      %v330 = vld [vmem:[%s315 + $0x14] sm:$0xf]
      %v331 = vld [vmem:[%s315 + $0x18] sm:$0xff]
      %v332 = vld [vmem:[%s315 + $0x20] sm:$0xf]
      %v333 = vld [vmem:[%s315 + $0x24] sm:$0xff]
      %v334 = vld [vmem:[%s315 + $0x2c] sm:$0xf]
      %v335 = vld [vmem:[%s315 + $0x30] sm:$0xff]
      %v336 = vld [vmem:[%s315 + $0x38] sm:$0xf]
      %v337 = vld [vmem:[%s315 + $0x3c] sm:$0xff]
      %v338 = vld [vmem:[%s315 + $0x44] sm:$0xf]
      %v339 = vld [vmem:[%s315 + $0x48] sm:$0xff]
      %v340 = vld [vmem:[%s315 + $0x50] sm:$0xf]
      %v341 = vld [vmem:[%s315 + $0x54] sm:$0xff]
      %v342 = vld [vmem:[%s315 + $0x5c] sm:$0xf]
      %v343 = vld [vmem:[%s2] sm:$0xf]
      %v344 = vld [vmem:[%s2 + $0x4] sm:$0xf]
      %v345 = vld [vmem:[%s2 + $0x8] sm:$0xf]
      %v346 = vld [vmem:[%s2 + $0xc] sm:$0xf]
      %v347 = vld [vmem:[%s2 + $0x10] sm:$0xf]
      %v348 = vld [vmem:[%s2 + $0x14] sm:$0xf]
      %v349 = vld [vmem:[%s2 + $0x18] sm:$0xf]
      %v350 = vld [vmem:[%s2 + $0x1c] sm:$0xf]
      %v351 = vld [vmem:[%s2 + $0x20] sm:$0xf]
      %v352 = vld [vmem:[%s2 + $0x24] sm:$0xf]
      %v353 = vld [vmem:[%s2 + $0x28] sm:$0xf]
      %v354 = vld [vmem:[%s2 + $0x2c] sm:$0xf]
      %v355 = vld [vmem:[%s2 + $0x30] sm:$0xf]
      %v356 = vld [vmem:[%s2 + $0x34] sm:$0xf]
      %v357 = vld [vmem:[%s2 + $0x38] sm:$0xf]
      %v358 = vld [vmem:[%s2 + $0x3c] sm:$0xf]
      %v359 = vld [vmem:[%s2 + $0x40] sm:$0xf]
      %v360 = vld [vmem:[%s2 + $0x44] sm:$0xf]
      %v361 = vld [vmem:[%s2 + $0x48] sm:$0xf]
      %v362 = vld [vmem:[%s2 + $0x4c] sm:$0xf]
      %v363 = vld [vmem:[%s2 + $0x50] sm:$0xf]
      %v364 = vld [vmem:[%s2 + $0x54] sm:$0xf]
      %v365 = vld [vmem:[%s2 + $0x58] sm:$0xf]
      %v366 = vld [vmem:[%s2 + $0x5c] sm:$0xf]
      %v367 = vld [vmem:[%s2 + $0x60] sm:$0xf]
      %v368 = vld [vmem:[%s2 + $0x64] sm:$0xf]
      %v369 = vld [vmem:[%s2 + $0x68] sm:$0xf]
      %v370 = vld [vmem:[%s2 + $0x6c] sm:$0xf]
      %v371 = vld [vmem:[%s2 + $0x70] sm:$0xf]
      %v372 = vld [vmem:[%s2 + $0x74] sm:$0xf]
      %v373 = vld [vmem:[%s2 + $0x78] sm:$0xf]
      %v374 = vld [vmem:[%s2 + $0x7c] sm:$0xf]
      %v375 = vld [vmem:[%s2 + $0x80] sm:$0xf]
      %v376 = vld [vmem:[%s2 + $0x84] sm:$0xf]
      %v377 = vld [vmem:[%s2 + $0x88] sm:$0xf]
      %v378 = vld [vmem:[%s2 + $0x8c] sm:$0xf]
      %v379 = vld [vmem:[%s2 + $0x90] sm:$0xf]
      %v380 = vld [vmem:[%s2 + $0x94] sm:$0xf]
      %v381 = vld [vmem:[%s2 + $0x98] sm:$0xf]
      %v382 = vld [vmem:[%s2 + $0x9c] sm:$0xf]
      %v383 = vld [vmem:[%s2 + $0xa0] sm:$0xf]
      %v384 = vld [vmem:[%s2 + $0xa4] sm:$0xf]
      %v385 = vld [vmem:[%s2 + $0xa8] sm:$0xf]
      %v386 = vld [vmem:[%s2 + $0xac] sm:$0xf]
      %v387 = vld [vmem:[%s2 + $0xb0] sm:$0xf]
      %v388 = vld [vmem:[%s2 + $0xb4] sm:$0xf]
      %v389 = vld [vmem:[%s2 + $0xb8] sm:$0xf]
      %v390 = vld [vmem:[%s2 + $0xbc] sm:$0xf]
      %s391 = scalar_lea.vmem %s315, 108
      %v392 = vld [vmem:[%s391] sm:$0xff]
      %v393 = vld [vmem:[%s391 + $0x8] sm:$0xf]
      %v394 = vld [vmem:[%s391 + $0xc] sm:$0xff]
      %v395 = vld [vmem:[%s391 + $0x14] sm:$0xf]
      %v396 = vld [vmem:[%s391 + $0x18] sm:$0xff]
      %v397 = vld [vmem:[%s391 + $0x20] sm:$0xf]
      %v398 = vld [vmem:[%s391 + $0x24] sm:$0xff]
      %v399 = vld [vmem:[%s391 + $0x2c] sm:$0xf]
      %v400 = vld [vmem:[%s391 + $0x30] sm:$0xff]
      %v401 = vld [vmem:[%s391 + $0x38] sm:$0xf]
      %v402 = vld [vmem:[%s391 + $0x3c] sm:$0xff]
      %v403 = vld [vmem:[%s391 + $0x44] sm:$0xf]
      %v404 = vld [vmem:[%s391 + $0x48] sm:$0xff]
      %v405 = vld [vmem:[%s391 + $0x50] sm:$0xf]
      %v406 = vld [vmem:[%s391 + $0x54] sm:$0xff]
      %v407 = vld [vmem:[%s391 + $0x5c] sm:$0xf]
      %s408 = scalar_lea.vmem %s2, 192
      %v409 = vld [vmem:[%s408] sm:$0xf]
      %v410 = vld [vmem:[%s408 + $0x4] sm:$0xf]
      %v411 = vld [vmem:[%s408 + $0x8] sm:$0xf]
      %v412 = vld [vmem:[%s408 + $0xc] sm:$0xf]
      %v413 = vld [vmem:[%s408 + $0x10] sm:$0xf]
      %v414 = vld [vmem:[%s408 + $0x14] sm:$0xf]
      %v415 = vld [vmem:[%s408 + $0x18] sm:$0xf]
      %v416 = vld [vmem:[%s408 + $0x1c] sm:$0xf]
      %v417 = vld [vmem:[%s408 + $0x20] sm:$0xf]
      %v418 = vld [vmem:[%s408 + $0x24] sm:$0xf]
      %v419 = vld [vmem:[%s408 + $0x28] sm:$0xf]
      %v420 = vld [vmem:[%s408 + $0x2c] sm:$0xf]
      %v421 = vld [vmem:[%s408 + $0x30] sm:$0xf]
      %v422 = vld [vmem:[%s408 + $0x34] sm:$0xf]
      %v423 = vld [vmem:[%s408 + $0x38] sm:$0xf]
      %v424 = vld [vmem:[%s408 + $0x3c] sm:$0xf]
      %v425 = vld [vmem:[%s408 + $0x40] sm:$0xf]
      %v426 = vld [vmem:[%s408 + $0x44] sm:$0xf]
      %v427 = vld [vmem:[%s408 + $0x48] sm:$0xf]
      %v428 = vld [vmem:[%s408 + $0x4c] sm:$0xf]
      %v429 = vld [vmem:[%s408 + $0x50] sm:$0xf]
      %v430 = vld [vmem:[%s408 + $0x54] sm:$0xf]
      %v431 = vld [vmem:[%s408 + $0x58] sm:$0xf]
      %v432 = vld [vmem:[%s408 + $0x5c] sm:$0xf]
      %v433 = vld [vmem:[%s408 + $0x60] sm:$0xf]
      %v434 = vld [vmem:[%s408 + $0x64] sm:$0xf]
      %v435 = vld [vmem:[%s408 + $0x68] sm:$0xf]
      %v436 = vld [vmem:[%s408 + $0x6c] sm:$0xf]
      %v437 = vld [vmem:[%s408 + $0x70] sm:$0xf]
      %v438 = vld [vmem:[%s408 + $0x74] sm:$0xf]
      %v439 = vld [vmem:[%s408 + $0x78] sm:$0xf]
      %v440 = vld [vmem:[%s408 + $0x7c] sm:$0xf]
      %v441 = vld [vmem:[%s408 + $0x80] sm:$0xf]
      %v442 = vld [vmem:[%s408 + $0x84] sm:$0xf]
      %v443 = vld [vmem:[%s408 + $0x88] sm:$0xf]
      %v444 = vld [vmem:[%s408 + $0x8c] sm:$0xf]
      %v445 = vld [vmem:[%s408 + $0x90] sm:$0xf]
      %v446 = vld [vmem:[%s408 + $0x94] sm:$0xf]
      %v447 = vld [vmem:[%s408 + $0x98] sm:$0xf]
      %v448 = vld [vmem:[%s408 + $0x9c] sm:$0xf]
      %v449 = vld [vmem:[%s408 + $0xa0] sm:$0xf]
      %v450 = vld [vmem:[%s408 + $0xa4] sm:$0xf]
      %v451 = vld [vmem:[%s408 + $0xa8] sm:$0xf]
      %v452 = vld [vmem:[%s408 + $0xac] sm:$0xf]
      %v453 = vld [vmem:[%s408 + $0xb0] sm:$0xf]
      %v454 = vld [vmem:[%s408 + $0xb4] sm:$0xf]
      %v455 = vld [vmem:[%s408 + $0xb8] sm:$0xf]
      %v456 = vld [vmem:[%s408 + $0xbc] sm:$0xf]
      %v473 = vunpack.c.l.b16 %v392
      %v474 = vunpack.c.h.b16 %v392
      %v475 = vunpack.c.l.b16 %v393
      %v476 = vunpack.c.l.b16 %v394
      %v477 = vunpack.c.h.b16 %v394
      %v478 = vunpack.c.l.b16 %v395
      %v479 = vunpack.c.l.b16 %v396
      %v480 = vunpack.c.h.b16 %v396
      %v481 = vunpack.c.l.b16 %v397
      %v482 = vunpack.c.l.b16 %v398
      %v483 = vunpack.c.h.b16 %v398
      %v484 = vunpack.c.l.b16 %v399
      %v485 = vunpack.c.l.b16 %v400
      %v486 = vunpack.c.h.b16 %v400
      %v487 = vunpack.c.l.b16 %v401
      %v488 = vunpack.c.l.b16 %v402
      %v489 = vunpack.c.h.b16 %v402
      %v490 = vunpack.c.l.b16 %v403
      %v491 = vunpack.c.l.b16 %v404
      %v492 = vunpack.c.h.b16 %v404
      %v493 = vunpack.c.l.b16 %v405
      %v494 = vunpack.c.l.b16 %v406
      %v495 = vunpack.c.h.b16 %v406
      %v496 = vunpack.c.l.b16 %v407
      %v497 = vpack.c.b16 %v476, %v473
      %v498 = vpack.c.b16 %v477, %v474
      %v499 = vpack.c.b16 %v478, %v475
      %v500 = vpack.c.b16 %v482, %v479
      %v501 = vpack.c.b16 %v483, %v480
      %v502 = vpack.c.b16 %v484, %v481
      %v503 = vpack.c.b16 %v488, %v485
      %v504 = vpack.c.b16 %v489, %v486
      %v505 = vpack.c.b16 %v490, %v487
      %v506 = vpack.c.b16 %v494, %v491
      %v507 = vpack.c.b16 %v495, %v492
      %v508 = vpack.c.b16 %v496, %v493
      %v569 = vunpack.c.l.b16 %v409
      %v570 = vunpack.c.l.b16 %v410
      %v571 = vunpack.c.l.b16 %v411
      %v572 = vunpack.c.l.b16 %v412
      %v573 = vunpack.c.l.b16 %v413
      %v574 = vunpack.c.l.b16 %v414
      %v575 = vunpack.c.l.b16 %v415
      %v576 = vunpack.c.l.b16 %v416
      %v577 = vunpack.c.l.b16 %v417
      %v578 = vunpack.c.l.b16 %v418
      %v579 = vunpack.c.l.b16 %v419
      %v580 = vunpack.c.l.b16 %v420
      %v581 = vunpack.c.l.b16 %v421
      %v582 = vunpack.c.l.b16 %v422
      %v583 = vunpack.c.l.b16 %v423
      %v584 = vunpack.c.l.b16 %v424
      %v585 = vunpack.c.l.b16 %v425
      %v586 = vunpack.c.l.b16 %v426
      %v587 = vunpack.c.l.b16 %v427
      %v588 = vunpack.c.l.b16 %v428
      %v589 = vunpack.c.l.b16 %v429
      %v590 = vunpack.c.l.b16 %v430
      %v591 = vunpack.c.l.b16 %v431
      %v592 = vunpack.c.l.b16 %v432
      %v593 = vunpack.c.l.b16 %v433
      %v594 = vunpack.c.l.b16 %v434
      %v595 = vunpack.c.l.b16 %v435
      %v596 = vunpack.c.l.b16 %v436
      %v597 = vunpack.c.l.b16 %v437
      %v598 = vunpack.c.l.b16 %v438
      %v599 = vunpack.c.l.b16 %v439
      %v600 = vunpack.c.l.b16 %v440
      %v601 = vunpack.c.l.b16 %v441
      %v602 = vunpack.c.l.b16 %v442
      %v603 = vunpack.c.l.b16 %v443
      %v604 = vunpack.c.l.b16 %v444
      %v605 = vunpack.c.l.b16 %v445
      %v606 = vunpack.c.l.b16 %v446
      %v607 = vunpack.c.l.b16 %v447
      %v608 = vunpack.c.l.b16 %v448
      %v609 = vunpack.c.l.b16 %v449
      %v610 = vunpack.c.l.b16 %v450
      %v611 = vunpack.c.l.b16 %v451
      %v612 = vunpack.c.l.b16 %v452
      %v613 = vunpack.c.l.b16 %v453
      %v614 = vunpack.c.l.b16 %v454
      %v615 = vunpack.c.l.b16 %v455
      %v616 = vunpack.c.l.b16 %v456
      %v617 = vpack.c.b16 %v570, %v569
      %v618 = vpack.c.b16 %v572, %v571
      %v619 = vpack.c.b16 %v574, %v573
      %v620 = vpack.c.b16 %v576, %v575
      %v621 = vpack.c.b16 %v578, %v577
      %v622 = vpack.c.b16 %v580, %v579
      %v623 = vpack.c.b16 %v582, %v581
      %v624 = vpack.c.b16 %v584, %v583
      %v625 = vpack.c.b16 %v586, %v585
      %v626 = vpack.c.b16 %v588, %v587
      %v627 = vpack.c.b16 %v590, %v589
      %v628 = vpack.c.b16 %v592, %v591
      %v629 = vpack.c.b16 %v594, %v593
      %v630 = vpack.c.b16 %v596, %v595
      %v631 = vpack.c.b16 %v598, %v597
      %v632 = vpack.c.b16 %v600, %v599
      %v633 = vpack.c.b16 %v602, %v601
      %v634 = vpack.c.b16 %v604, %v603
      %v635 = vpack.c.b16 %v606, %v605
      %v636 = vpack.c.b16 %v608, %v607
      %v637 = vpack.c.b16 %v610, %v609
      %v638 = vpack.c.b16 %v612, %v611
      %v639 = vpack.c.b16 %v614, %v613
      %v640 = vpack.c.b16 %v616, %v615
      %665 = vmatprep.subr.bf16.mxu0 0
      %666 = vmatpush1.bf16.msra.mxu0 %v624
      %667 = vmatprep.subr.bf16.mxu0 0
      %668 = vmatpush1.bf16.msra.mxu0 %v623
      %669 = vmatprep.subr.bf16.mxu0 0
      %670 = vmatpush1.bf16.msra.mxu0 %v622
      %671 = vmatprep.subr.bf16.mxu0 0
      %672 = vmatpush1.bf16.msra.mxu0 %v621
      %673 = vmatprep.subr.bf16.mxu0 0
      %674 = vmatpush1.bf16.msra.mxu0 %v620
      %675 = vmatprep.subr.bf16.mxu0 0
      %676 = vmatpush1.bf16.msra.mxu0 %v619
      %677 = vmatprep.subr.bf16.mxu0 0
      %678 = vmatpush1.bf16.msra.mxu0 %v618
      %679 = vmatprep.subr.bf16.mxu0 0
      %680 = vmatpush1.bf16.msra.mxu0 %v617
      %681 = vmatprep.subr.bf16.mxu0 0
      %682 = vmatpush2.bf16.msra.mxu0 %v632
      %683 = vmatprep.subr.bf16.mxu0 0
      %684 = vmatpush2.bf16.msra.mxu0 %v631
      %685 = vmatprep.subr.bf16.mxu0 0
      %686 = vmatpush2.bf16.msra.mxu0 %v630
      %687 = vmatprep.subr.bf16.mxu0 0
      %688 = vmatpush2.bf16.msra.mxu0 %v629
      %689 = vmatprep.subr.bf16.mxu0 0
      %690 = vmatpush2.bf16.msra.mxu0 %v628
      %691 = vmatprep.subr.bf16.mxu0 0
      %692 = vmatpush2.bf16.msra.mxu0 %v627
      %693 = vmatprep.subr.bf16.mxu0 0
      %694 = vmatpush2.bf16.msra.mxu0 %v626
      %695 = vmatprep.subr.bf16.mxu0 0
      %696 = vmatpush2.bf16.msra.mxu0 %v625
      %697 = vmatprep.mubr.bf16.mxu0 %v498
      %698 = vmatmul.mubr.bf16.gmra.mxu0 %v497
      %v699 = vpop.f32.mrf.mxu0
      %v700 = vadd.f32 0.0, %v699
      %v701 = vpop.f32.mrf.mxu0
      %v702 = vpop.f32.mrf.mxu0
      %v703 = vadd.f32 0.0, %v702
      %v704 = vpop.f32.mrf.mxu0
      %705 = vmatprep.mubr.bf16.mxu0 %v501
      %706 = vmatmul.mubr.bf16.gmra.mxu0 %v500
      %v707 = vpop.f32.mrf.mxu0
      %v708 = vadd.f32 0.0, %v707
      %v709 = vpop.f32.mrf.mxu0
      %v710 = vpop.f32.mrf.mxu0
      %v711 = vadd.f32 0.0, %v710
      %v712 = vpop.f32.mrf.mxu0
      %713 = vmatprep.mubr.bf16.mxu0 %v504
      %714 = vmatmul.mubr.bf16.gmra.mxu0 %v503
      %v715 = vpop.f32.mrf.mxu0
      %v716 = vadd.f32 0.0, %v715
      %v717 = vpop.f32.mrf.mxu0
      %v718 = vpop.f32.mrf.mxu0
      %v719 = vadd.f32 0.0, %v718
      %v720 = vpop.f32.mrf.mxu0
      %721 = vmatprep.mubr.bf16.mxu0 %v507
      %722 = vmatmul.mubr.bf16.gmra.mxu0 %v506
      %v723 = vpop.f32.mrf.mxu0
      %v724 = vadd.f32 0.0, %v723
      %v725 = vpop.f32.mrf.mxu0
      %v726 = vpop.f32.mrf.mxu0
      %v727 = vadd.f32 0.0, %v726
      %v728 = vpop.f32.mrf.mxu0
      %729 = vdwg.mxu0
      %730 = vmatprep.subr.bf16.mxu0 0
      %731 = vmatpush1.bf16.msra.mxu0 %v640
      %732 = vmatprep.subr.bf16.mxu0 0
      %733 = vmatpush1.bf16.msra.mxu0 %v639
      %734 = vmatprep.subr.bf16.mxu0 0
      %735 = vmatpush1.bf16.msra.mxu0 %v638
      %736 = vmatprep.subr.bf16.mxu0 0
      %737 = vmatpush1.bf16.msra.mxu0 %v637
      %738 = vmatprep.subr.bf16.mxu0 0
      %739 = vmatpush1.bf16.msra.mxu0 %v636
      %740 = vmatprep.subr.bf16.mxu0 0
      %741 = vmatpush1.bf16.msra.mxu0 %v635
      %742 = vmatprep.subr.bf16.mxu0 0
      %743 = vmatpush1.bf16.msra.mxu0 %v634
      %744 = vmatprep.subr.bf16.mxu0 0
      %745 = vmatpush1.bf16.msra.mxu0 %v633
      %746 = vmatprep.subr.bf16.mxu0 0
      %747 = vmatpush2.bf16.msra.mxu0 0
      %748 = vmatprep.subr.bf16.mxu0 0
      %749 = vmatpush2.bf16.msra.mxu0 0
      %750 = vmatprep.subr.bf16.mxu0 0
      %751 = vmatpush2.bf16.msra.mxu0 0
      %752 = vmatprep.subr.bf16.mxu0 0
      %753 = vmatpush2.bf16.msra.mxu0 0
      %754 = vmatprep.subr.bf16.mxu0 0
      %755 = vmatpush2.bf16.msra.mxu0 0
      %756 = vmatprep.subr.bf16.mxu0 0
      %757 = vmatpush2.bf16.msra.mxu0 0
      %758 = vmatprep.subr.bf16.mxu0 0
      %759 = vmatpush2.bf16.msra.mxu0 0
      %760 = vmatprep.subr.bf16.mxu0 0
      %761 = vmatpush2.bf16.msra.mxu0 0
      %762 = vmatprep.mubr.bf16.mxu0 0
      %763 = vmatmul.mubr.bf16.gmra.mxu0 %v499
      %v764 = vpop.f32.mrf.mxu0
      %v765 = vadd.f32 %v700, %v764
      %v766 = vpop.f32.mrf.mxu0
      %v767 = vpop.f32.mrf.mxu0
      %v768 = vadd.f32 %v703, %v767
      %v769 = vpop.f32.mrf.mxu0
      %770 = vmatprep.mubr.bf16.mxu0 0
      %771 = vmatmul.mubr.bf16.gmra.mxu0 %v502
      %v772 = vpop.f32.mrf.mxu0
      %v773 = vadd.f32 %v708, %v772
      %v774 = vpop.f32.mrf.mxu0
      %v775 = vpop.f32.mrf.mxu0
      %v776 = vadd.f32 %v711, %v775
      %v777 = vpop.f32.mrf.mxu0
      %778 = vmatprep.mubr.bf16.mxu0 0
      %779 = vmatmul.mubr.bf16.gmra.mxu0 %v505
      %v780 = vpop.f32.mrf.mxu0
      %v781 = vadd.f32 %v716, %v780
      %v782 = vpop.f32.mrf.mxu0
      %v783 = vpop.f32.mrf.mxu0
      %v784 = vadd.f32 %v719, %v783
      %v785 = vpop.f32.mrf.mxu0
      %786 = vmatprep.mubr.bf16.mxu0 0
      %787 = vmatmul.mubr.bf16.gmra.mxu0 %v508
      %v788 = vpop.f32.mrf.mxu0
      %v789 = vadd.f32 %v724, %v788
      %v790 = vpop.f32.mrf.mxu0
      %v791 = vpop.f32.mrf.mxu0
      %v792 = vadd.f32 %v727, %v791
      %v793 = vpop.f32.mrf.mxu0
      %794 = vdwg.mxu0
      %v811 = vunpack.c.l.b16 %v327
      %v812 = vunpack.c.h.b16 %v327
      %v813 = vunpack.c.l.b16 %v328
      %v814 = vunpack.c.l.b16 %v329
      %v815 = vunpack.c.h.b16 %v329
      %v816 = vunpack.c.l.b16 %v330
      %v817 = vunpack.c.l.b16 %v331
      %v818 = vunpack.c.h.b16 %v331
      %v819 = vunpack.c.l.b16 %v332
      %v820 = vunpack.c.l.b16 %v333
      %v821 = vunpack.c.h.b16 %v333
      %v822 = vunpack.c.l.b16 %v334
      %v823 = vunpack.c.l.b16 %v335
      %v824 = vunpack.c.h.b16 %v335
      %v825 = vunpack.c.l.b16 %v336
      %v826 = vunpack.c.l.b16 %v337
      %v827 = vunpack.c.h.b16 %v337
      %v828 = vunpack.c.l.b16 %v338
      %v829 = vunpack.c.l.b16 %v339
      %v830 = vunpack.c.h.b16 %v339
      %v831 = vunpack.c.l.b16 %v340
      %v832 = vunpack.c.l.b16 %v341
      %v833 = vunpack.c.h.b16 %v341
      %v834 = vunpack.c.l.b16 %v342
      %v835 = vpack.c.b16 %v814, %v811
      %v836 = vpack.c.b16 %v815, %v812
      %v837 = vpack.c.b16 %v816, %v813
      %v838 = vpack.c.b16 %v820, %v817
      %v839 = vpack.c.b16 %v821, %v818
      %v840 = vpack.c.b16 %v822, %v819
      %v841 = vpack.c.b16 %v826, %v823
      %v842 = vpack.c.b16 %v827, %v824
      %v843 = vpack.c.b16 %v828, %v825
      %v844 = vpack.c.b16 %v832, %v829
      %v845 = vpack.c.b16 %v833, %v830
      %v846 = vpack.c.b16 %v834, %v831
      %v907 = vunpack.c.l.b16 %v343
      %v908 = vunpack.c.l.b16 %v344
      %v909 = vunpack.c.l.b16 %v345
      %v910 = vunpack.c.l.b16 %v346
      %v911 = vunpack.c.l.b16 %v347
      %v912 = vunpack.c.l.b16 %v348
      %v913 = vunpack.c.l.b16 %v349
      %v914 = vunpack.c.l.b16 %v350
      %v915 = vunpack.c.l.b16 %v351
      %v916 = vunpack.c.l.b16 %v352
      %v917 = vunpack.c.l.b16 %v353
      %v918 = vunpack.c.l.b16 %v354
      %v919 = vunpack.c.l.b16 %v355
      %v920 = vunpack.c.l.b16 %v356
      %v921 = vunpack.c.l.b16 %v357
      %v922 = vunpack.c.l.b16 %v358
      %v923 = vunpack.c.l.b16 %v359
      %v924 = vunpack.c.l.b16 %v360
      %v925 = vunpack.c.l.b16 %v361
      %v926 = vunpack.c.l.b16 %v362
      %v927 = vunpack.c.l.b16 %v363
      %v928 = vunpack.c.l.b16 %v364
      %v929 = vunpack.c.l.b16 %v365
      %v930 = vunpack.c.l.b16 %v366
      %v931 = vunpack.c.l.b16 %v367
      %v932 = vunpack.c.l.b16 %v368
      %v933 = vunpack.c.l.b16 %v369
      %v934 = vunpack.c.l.b16 %v370
      %v935 = vunpack.c.l.b16 %v371
      %v936 = vunpack.c.l.b16 %v372
      %v937 = vunpack.c.l.b16 %v373
      %v938 = vunpack.c.l.b16 %v374
      %v939 = vunpack.c.l.b16 %v375
      %v940 = vunpack.c.l.b16 %v376
      %v941 = vunpack.c.l.b16 %v377
      %v942 = vunpack.c.l.b16 %v378
      %v943 = vunpack.c.l.b16 %v379
      %v944 = vunpack.c.l.b16 %v380
      %v945 = vunpack.c.l.b16 %v381
      %v946 = vunpack.c.l.b16 %v382
      %v947 = vunpack.c.l.b16 %v383
      %v948 = vunpack.c.l.b16 %v384
      %v949 = vunpack.c.l.b16 %v385
      %v950 = vunpack.c.l.b16 %v386
      %v951 = vunpack.c.l.b16 %v387
      %v952 = vunpack.c.l.b16 %v388
      %v953 = vunpack.c.l.b16 %v389
      %v954 = vunpack.c.l.b16 %v390
      %v955 = vpack.c.b16 %v908, %v907
      %v956 = vpack.c.b16 %v910, %v909
      %v957 = vpack.c.b16 %v912, %v911
      %v958 = vpack.c.b16 %v914, %v913
      %v959 = vpack.c.b16 %v916, %v915
      %v960 = vpack.c.b16 %v918, %v917
      %v961 = vpack.c.b16 %v920, %v919
      %v962 = vpack.c.b16 %v922, %v921
      %v963 = vpack.c.b16 %v924, %v923
      %v964 = vpack.c.b16 %v926, %v925
      %v965 = vpack.c.b16 %v928, %v927
      %v966 = vpack.c.b16 %v930, %v929
      %v967 = vpack.c.b16 %v932, %v931
      %v968 = vpack.c.b16 %v934, %v933
      %v969 = vpack.c.b16 %v936, %v935
      %v970 = vpack.c.b16 %v938, %v937
      %v971 = vpack.c.b16 %v940, %v939
      %v972 = vpack.c.b16 %v942, %v941
      %v973 = vpack.c.b16 %v944, %v943
      %v974 = vpack.c.b16 %v946, %v945
      %v975 = vpack.c.b16 %v948, %v947
      %v976 = vpack.c.b16 %v950, %v949
      %v977 = vpack.c.b16 %v952, %v951
      %v978 = vpack.c.b16 %v954, %v953
      %1003 = vmatprep.subr.bf16.mxu0 0
      %1004 = vmatpush1.bf16.msra.mxu0 %v962
      %1005 = vmatprep.subr.bf16.mxu0 0
      %1006 = vmatpush1.bf16.msra.mxu0 %v961
      %1007 = vmatprep.subr.bf16.mxu0 0
      %1008 = vmatpush1.bf16.msra.mxu0 %v960
      %1009 = vmatprep.subr.bf16.mxu0 0
      %1010 = vmatpush1.bf16.msra.mxu0 %v959
      %1011 = vmatprep.subr.bf16.mxu0 0
      %1012 = vmatpush1.bf16.msra.mxu0 %v958
      %1013 = vmatprep.subr.bf16.mxu0 0
      %1014 = vmatpush1.bf16.msra.mxu0 %v957
      %1015 = vmatprep.subr.bf16.mxu0 0
      %1016 = vmatpush1.bf16.msra.mxu0 %v956
      %1017 = vmatprep.subr.bf16.mxu0 0
      %1018 = vmatpush1.bf16.msra.mxu0 %v955
      %1019 = vmatprep.subr.bf16.mxu0 0
      %1020 = vmatpush2.bf16.msra.mxu0 %v970
      %1021 = vmatprep.subr.bf16.mxu0 0
      %1022 = vmatpush2.bf16.msra.mxu0 %v969
      %1023 = vmatprep.subr.bf16.mxu0 0
      %1024 = vmatpush2.bf16.msra.mxu0 %v968
      %1025 = vmatprep.subr.bf16.mxu0 0
      %1026 = vmatpush2.bf16.msra.mxu0 %v967
      %1027 = vmatprep.subr.bf16.mxu0 0
      %1028 = vmatpush2.bf16.msra.mxu0 %v966
      %1029 = vmatprep.subr.bf16.mxu0 0
      %1030 = vmatpush2.bf16.msra.mxu0 %v965
      %1031 = vmatprep.subr.bf16.mxu0 0
      %1032 = vmatpush2.bf16.msra.mxu0 %v964
      %1033 = vmatprep.subr.bf16.mxu0 0
      %1034 = vmatpush2.bf16.msra.mxu0 %v963
      %1035 = vmatprep.mubr.bf16.mxu0 %v836
      %1036 = vmatmul.mubr.bf16.gmra.mxu0 %v835
      %v1037 = vpop.f32.mrf.mxu0
      %v1038 = vadd.f32 %v765, %v1037
      %v1039 = vpop.f32.mrf.mxu0
      %v1040 = vpop.f32.mrf.mxu0
      %v1041 = vadd.f32 %v768, %v1040
      %v1042 = vpop.f32.mrf.mxu0
      %1043 = vmatprep.mubr.bf16.mxu0 %v839
      %1044 = vmatmul.mubr.bf16.gmra.mxu0 %v838
      %v1045 = vpop.f32.mrf.mxu0
      %v1046 = vadd.f32 %v773, %v1045
      %v1047 = vpop.f32.mrf.mxu0
      %v1048 = vpop.f32.mrf.mxu0
      %v1049 = vadd.f32 %v776, %v1048
      %v1050 = vpop.f32.mrf.mxu0
      %1051 = vmatprep.mubr.bf16.mxu0 %v842
      %1052 = vmatmul.mubr.bf16.gmra.mxu0 %v841
      %v1053 = vpop.f32.mrf.mxu0
      %v1054 = vadd.f32 %v781, %v1053
      %v1055 = vpop.f32.mrf.mxu0
      %v1056 = vpop.f32.mrf.mxu0
      %v1057 = vadd.f32 %v784, %v1056
      %v1058 = vpop.f32.mrf.mxu0
      %1059 = vmatprep.mubr.bf16.mxu0 %v845
      %1060 = vmatmul.mubr.bf16.gmra.mxu0 %v844
      %v1061 = vpop.f32.mrf.mxu0
      %v1062 = vadd.f32 %v789, %v1061
      %v1063 = vpop.f32.mrf.mxu0
      %v1064 = vpop.f32.mrf.mxu0
      %v1065 = vadd.f32 %v792, %v1064
      %v1066 = vpop.f32.mrf.mxu0
      %1067 = vdwg.mxu0
      %1068 = vmatprep.subr.bf16.mxu0 0
      %1069 = vmatpush1.bf16.msra.mxu0 %v978
      %1070 = vmatprep.subr.bf16.mxu0 0
      %1071 = vmatpush1.bf16.msra.mxu0 %v977
      %1072 = vmatprep.subr.bf16.mxu0 0
      %1073 = vmatpush1.bf16.msra.mxu0 %v976
      %1074 = vmatprep.subr.bf16.mxu0 0
      %1075 = vmatpush1.bf16.msra.mxu0 %v975
      %1076 = vmatprep.subr.bf16.mxu0 0
      %1077 = vmatpush1.bf16.msra.mxu0 %v974
      %1078 = vmatprep.subr.bf16.mxu0 0
      %1079 = vmatpush1.bf16.msra.mxu0 %v973
      %1080 = vmatprep.subr.bf16.mxu0 0
      %1081 = vmatpush1.bf16.msra.mxu0 %v972
      %1082 = vmatprep.subr.bf16.mxu0 0
      %1083 = vmatpush1.bf16.msra.mxu0 %v971
      %1084 = vmatprep.subr.bf16.mxu0 0
      %1085 = vmatpush2.bf16.msra.mxu0 0
      %1086 = vmatprep.subr.bf16.mxu0 0
      %1087 = vmatpush2.bf16.msra.mxu0 0
      %1088 = vmatprep.subr.bf16.mxu0 0
      %1089 = vmatpush2.bf16.msra.mxu0 0
      %1090 = vmatprep.subr.bf16.mxu0 0
      %1091 = vmatpush2.bf16.msra.mxu0 0
      %1092 = vmatprep.subr.bf16.mxu0 0
      %1093 = vmatpush2.bf16.msra.mxu0 0
      %1094 = vmatprep.subr.bf16.mxu0 0
      %1095 = vmatpush2.bf16.msra.mxu0 0
      %1096 = vmatprep.subr.bf16.mxu0 0
      %1097 = vmatpush2.bf16.msra.mxu0 0
      %1098 = vmatprep.subr.bf16.mxu0 0
      %1099 = vmatpush2.bf16.msra.mxu0 0
      %1100 = vmatprep.mubr.bf16.mxu0 0
      %1101 = vmatmul.mubr.bf16.gmra.mxu0 %v837
      %v1102 = vpop.f32.mrf.mxu0
      %v1103 = vadd.f32 %v1038, %v1102
      %v1104 = vpop.f32.mrf.mxu0
      %v1105 = vpop.f32.mrf.mxu0
      %v1106 = vadd.f32 %v1041, %v1105
      %v1107 = vpop.f32.mrf.mxu0
      %1108 = vmatprep.mubr.bf16.mxu0 0
      %1109 = vmatmul.mubr.bf16.gmra.mxu0 %v840
      %v1110 = vpop.f32.mrf.mxu0
      %v1111 = vadd.f32 %v1046, %v1110
      %v1112 = vpop.f32.mrf.mxu0
      %v1113 = vpop.f32.mrf.mxu0
      %v1114 = vadd.f32 %v1049, %v1113
      %v1115 = vpop.f32.mrf.mxu0
      %1116 = vmatprep.mubr.bf16.mxu0 0
      %1117 = vmatmul.mubr.bf16.gmra.mxu0 %v843
      %v1118 = vpop.f32.mrf.mxu0
      %v1119 = vadd.f32 %v1054, %v1118
      %v1120 = vpop.f32.mrf.mxu0
      %v1121 = vpop.f32.mrf.mxu0
      %v1122 = vadd.f32 %v1057, %v1121
      %v1123 = vpop.f32.mrf.mxu0
      %1124 = vmatprep.mubr.bf16.mxu0 0
      %1125 = vmatmul.mubr.bf16.gmra.mxu0 %v846
      %v1126 = vpop.f32.mrf.mxu0
      %v1127 = vadd.f32 %v1062, %v1126
      %v1128 = vpop.f32.mrf.mxu0
      %v1129 = vpop.f32.mrf.mxu0
      %v1130 = vadd.f32 %v1065, %v1129
      %v1131 = vpop.f32.mrf.mxu0
      %1132 = vdwg.mxu0
      %v1133 = vld [vmem:[%s315 + $0xc] sm:$0xff]
      %v1134 = vld [vmem:[%s315 + $0x14] sm:$0xf]
      %v1135 = vld [vmem:[%s315 + $0x18] sm:$0xff]
      %v1136 = vld [vmem:[%s315 + $0x20] sm:$0xf]
      %v1137 = vld [vmem:[%s315 + $0x24] sm:$0xff]
      %v1138 = vld [vmem:[%s315 + $0x2c] sm:$0xf]
      %v1139 = vld [vmem:[%s315 + $0x30] sm:$0xff]
      %v1140 = vld [vmem:[%s315 + $0x38] sm:$0xf]
      %v1141 = vld [vmem:[%s315 + $0x3c] sm:$0xff]
      %v1142 = vld [vmem:[%s315 + $0x44] sm:$0xf]
      %v1143 = vld [vmem:[%s315 + $0x48] sm:$0xff]
      %v1144 = vld [vmem:[%s315 + $0x50] sm:$0xf]
      %v1145 = vld [vmem:[%s315 + $0x54] sm:$0xff]
      %v1146 = vld [vmem:[%s315 + $0x5c] sm:$0xf]
      %v1147 = vld [vmem:[%s315 + $0x60] sm:$0xff]
      %v1148 = vld [vmem:[%s315 + $0x68] sm:$0xf]
      %s1149 = scalar_lea.vmem %s2, 384
      %v1150 = vld [vmem:[%s1149] sm:$0xf]
      %v1151 = vld [vmem:[%s1149 + $0x4] sm:$0xf]
      %v1152 = vld [vmem:[%s1149 + $0x8] sm:$0xf]
      %v1153 = vld [vmem:[%s1149 + $0xc] sm:$0xf]
      %v1154 = vld [vmem:[%s1149 + $0x10] sm:$0xf]
      %v1155 = vld [vmem:[%s1149 + $0x14] sm:$0xf]
      %v1156 = vld [vmem:[%s1149 + $0x18] sm:$0xf]
      %v1157 = vld [vmem:[%s1149 + $0x1c] sm:$0xf]
      %v1158 = vld [vmem:[%s1149 + $0x20] sm:$0xf]
      %v1159 = vld [vmem:[%s1149 + $0x24] sm:$0xf]
      %v1160 = vld [vmem:[%s1149 + $0x28] sm:$0xf]
      %v1161 = vld [vmem:[%s1149 + $0x2c] sm:$0xf]
      %v1162 = vld [vmem:[%s1149 + $0x30] sm:$0xf]
      %v1163 = vld [vmem:[%s1149 + $0x34] sm:$0xf]
      %v1164 = vld [vmem:[%s1149 + $0x38] sm:$0xf]
      %v1165 = vld [vmem:[%s1149 + $0x3c] sm:$0xf]
      %v1166 = vld [vmem:[%s1149 + $0x40] sm:$0xf]
      %v1167 = vld [vmem:[%s1149 + $0x44] sm:$0xf]
      %v1168 = vld [vmem:[%s1149 + $0x48] sm:$0xf]
      %v1169 = vld [vmem:[%s1149 + $0x4c] sm:$0xf]
      %v1170 = vld [vmem:[%s1149 + $0x50] sm:$0xf]
      %v1171 = vld [vmem:[%s1149 + $0x54] sm:$0xf]
      %v1172 = vld [vmem:[%s1149 + $0x58] sm:$0xf]
      %v1173 = vld [vmem:[%s1149 + $0x5c] sm:$0xf]
      %v1174 = vld [vmem:[%s1149 + $0x60] sm:$0xf]
      %v1175 = vld [vmem:[%s1149 + $0x64] sm:$0xf]
      %v1176 = vld [vmem:[%s1149 + $0x68] sm:$0xf]
      %v1177 = vld [vmem:[%s1149 + $0x6c] sm:$0xf]
      %v1178 = vld [vmem:[%s1149 + $0x70] sm:$0xf]
      %v1179 = vld [vmem:[%s1149 + $0x74] sm:$0xf]
      %v1180 = vld [vmem:[%s1149 + $0x78] sm:$0xf]
      %v1181 = vld [vmem:[%s1149 + $0x7c] sm:$0xf]
      %v1182 = vld [vmem:[%s1149 + $0x80] sm:$0xf]
      %v1183 = vld [vmem:[%s1149 + $0x84] sm:$0xf]
      %v1184 = vld [vmem:[%s1149 + $0x88] sm:$0xf]
      %v1185 = vld [vmem:[%s1149 + $0x8c] sm:$0xf]
      %v1186 = vld [vmem:[%s1149 + $0x90] sm:$0xf]
      %v1187 = vld [vmem:[%s1149 + $0x94] sm:$0xf]
      %v1188 = vld [vmem:[%s1149 + $0x98] sm:$0xf]
      %v1189 = vld [vmem:[%s1149 + $0x9c] sm:$0xf]
      %v1190 = vld [vmem:[%s1149 + $0xa0] sm:$0xf]
      %v1191 = vld [vmem:[%s1149 + $0xa4] sm:$0xf]
      %v1192 = vld [vmem:[%s1149 + $0xa8] sm:$0xf]
      %v1193 = vld [vmem:[%s1149 + $0xac] sm:$0xf]
      %v1194 = vld [vmem:[%s1149 + $0xb0] sm:$0xf]
      %v1195 = vld [vmem:[%s1149 + $0xb4] sm:$0xf]
      %v1196 = vld [vmem:[%s1149 + $0xb8] sm:$0xf]
      %v1197 = vld [vmem:[%s1149 + $0xbc] sm:$0xf]
      %v1214 = vunpack.c.l.b16 %v1133
      %v1215 = vunpack.c.h.b16 %v1133
      %v1216 = vunpack.c.l.b16 %v1134
      %v1217 = vunpack.c.l.b16 %v1135
      %v1218 = vunpack.c.h.b16 %v1135
      %v1219 = vunpack.c.l.b16 %v1136
      %v1220 = vunpack.c.l.b16 %v1137
      %v1221 = vunpack.c.h.b16 %v1137
      %v1222 = vunpack.c.l.b16 %v1138
      %v1223 = vunpack.c.l.b16 %v1139
      %v1224 = vunpack.c.h.b16 %v1139
      %v1225 = vunpack.c.l.b16 %v1140
      %v1226 = vunpack.c.l.b16 %v1141
      %v1227 = vunpack.c.h.b16 %v1141
      %v1228 = vunpack.c.l.b16 %v1142
      %v1229 = vunpack.c.l.b16 %v1143
      %v1230 = vunpack.c.h.b16 %v1143
      %v1231 = vunpack.c.l.b16 %v1144
      %v1232 = vunpack.c.l.b16 %v1145
      %v1233 = vunpack.c.h.b16 %v1145
      %v1234 = vunpack.c.l.b16 %v1146
      %v1235 = vunpack.c.l.b16 %v1147
      %v1236 = vunpack.c.h.b16 %v1147
      %v1237 = vunpack.c.l.b16 %v1148
      %v1238 = vpack.c.b16 %v1217, %v1214
      %v1239 = vpack.c.b16 %v1218, %v1215
      %v1240 = vpack.c.b16 %v1219, %v1216
      %v1241 = vpack.c.b16 %v1223, %v1220
      %v1242 = vpack.c.b16 %v1224, %v1221
      %v1243 = vpack.c.b16 %v1225, %v1222
      %v1244 = vpack.c.b16 %v1229, %v1226
      %v1245 = vpack.c.b16 %v1230, %v1227
      %v1246 = vpack.c.b16 %v1231, %v1228
      %v1247 = vpack.c.b16 %v1235, %v1232
      %v1248 = vpack.c.b16 %v1236, %v1233
      %v1249 = vpack.c.b16 %v1237, %v1234
      %v1310 = vunpack.c.l.b16 %v1150
      %v1311 = vunpack.c.l.b16 %v1151
      %v1312 = vunpack.c.l.b16 %v1152
      %v1313 = vunpack.c.l.b16 %v1153
      %v1314 = vunpack.c.l.b16 %v1154
      %v1315 = vunpack.c.l.b16 %v1155
      %v1316 = vunpack.c.l.b16 %v1156
      %v1317 = vunpack.c.l.b16 %v1157
      %v1318 = vunpack.c.l.b16 %v1158
      %v1319 = vunpack.c.l.b16 %v1159
      %v1320 = vunpack.c.l.b16 %v1160
      %v1321 = vunpack.c.l.b16 %v1161
      %v1322 = vunpack.c.l.b16 %v1162
      %v1323 = vunpack.c.l.b16 %v1163
      %v1324 = vunpack.c.l.b16 %v1164
      %v1325 = vunpack.c.l.b16 %v1165
      %v1326 = vunpack.c.l.b16 %v1166
      %v1327 = vunpack.c.l.b16 %v1167
      %v1328 = vunpack.c.l.b16 %v1168
      %v1329 = vunpack.c.l.b16 %v1169
      %v1330 = vunpack.c.l.b16 %v1170
      %v1331 = vunpack.c.l.b16 %v1171
      %v1332 = vunpack.c.l.b16 %v1172
      %v1333 = vunpack.c.l.b16 %v1173
      %v1334 = vunpack.c.l.b16 %v1174
      %v1335 = vunpack.c.l.b16 %v1175
      %v1336 = vunpack.c.l.b16 %v1176
      %v1337 = vunpack.c.l.b16 %v1177
      %v1338 = vunpack.c.l.b16 %v1178
      %v1339 = vunpack.c.l.b16 %v1179
      %v1340 = vunpack.c.l.b16 %v1180
      %v1341 = vunpack.c.l.b16 %v1181
      %v1342 = vunpack.c.l.b16 %v1182
      %v1343 = vunpack.c.l.b16 %v1183
      %v1344 = vunpack.c.l.b16 %v1184
      %v1345 = vunpack.c.l.b16 %v1185
      %v1346 = vunpack.c.l.b16 %v1186
      %v1347 = vunpack.c.l.b16 %v1187
      %v1348 = vunpack.c.l.b16 %v1188
      %v1349 = vunpack.c.l.b16 %v1189
      %v1350 = vunpack.c.l.b16 %v1190
      %v1351 = vunpack.c.l.b16 %v1191
      %v1352 = vunpack.c.l.b16 %v1192
      %v1353 = vunpack.c.l.b16 %v1193
      %v1354 = vunpack.c.l.b16 %v1194
      %v1355 = vunpack.c.l.b16 %v1195
      %v1356 = vunpack.c.l.b16 %v1196
      %v1357 = vunpack.c.l.b16 %v1197
      %v1358 = vpack.c.b16 %v1311, %v1310
      %v1359 = vpack.c.b16 %v1313, %v1312
      %v1360 = vpack.c.b16 %v1315, %v1314
      %v1361 = vpack.c.b16 %v1317, %v1316
      %v1362 = vpack.c.b16 %v1319, %v1318
      %v1363 = vpack.c.b16 %v1321, %v1320
      %v1364 = vpack.c.b16 %v1323, %v1322
      %v1365 = vpack.c.b16 %v1325, %v1324
      %v1366 = vpack.c.b16 %v1327, %v1326
      %v1367 = vpack.c.b16 %v1329, %v1328
      %v1368 = vpack.c.b16 %v1331, %v1330
      %v1369 = vpack.c.b16 %v1333, %v1332
      %v1370 = vpack.c.b16 %v1335, %v1334
      %v1371 = vpack.c.b16 %v1337, %v1336
      %v1372 = vpack.c.b16 %v1339, %v1338
      %v1373 = vpack.c.b16 %v1341, %v1340
      %v1374 = vpack.c.b16 %v1343, %v1342
      %v1375 = vpack.c.b16 %v1345, %v1344
      %v1376 = vpack.c.b16 %v1347, %v1346
      %v1377 = vpack.c.b16 %v1349, %v1348
      %v1378 = vpack.c.b16 %v1351, %v1350
      %v1379 = vpack.c.b16 %v1353, %v1352
      %v1380 = vpack.c.b16 %v1355, %v1354
      %v1381 = vpack.c.b16 %v1357, %v1356
      %1406 = vmatprep.subr.bf16.mxu0 0
      %1407 = vmatpush1.bf16.msra.mxu0 %v1365
      %1408 = vmatprep.subr.bf16.mxu0 0
      %1409 = vmatpush1.bf16.msra.mxu0 %v1364
      %1410 = vmatprep.subr.bf16.mxu0 0
      %1411 = vmatpush1.bf16.msra.mxu0 %v1363
      %1412 = vmatprep.subr.bf16.mxu0 0
      %1413 = vmatpush1.bf16.msra.mxu0 %v1362
      %1414 = vmatprep.subr.bf16.mxu0 0
      %1415 = vmatpush1.bf16.msra.mxu0 %v1361
      %1416 = vmatprep.subr.bf16.mxu0 0
      %1417 = vmatpush1.bf16.msra.mxu0 %v1360
      %1418 = vmatprep.subr.bf16.mxu0 0
      %1419 = vmatpush1.bf16.msra.mxu0 %v1359
      %1420 = vmatprep.subr.bf16.mxu0 0
      %1421 = vmatpush1.bf16.msra.mxu0 %v1358
      %1422 = vmatprep.subr.bf16.mxu0 0
      %1423 = vmatpush2.bf16.msra.mxu0 %v1373
      %1424 = vmatprep.subr.bf16.mxu0 0
      %1425 = vmatpush2.bf16.msra.mxu0 %v1372
      %1426 = vmatprep.subr.bf16.mxu0 0
      %1427 = vmatpush2.bf16.msra.mxu0 %v1371
      %1428 = vmatprep.subr.bf16.mxu0 0
      %1429 = vmatpush2.bf16.msra.mxu0 %v1370
      %1430 = vmatprep.subr.bf16.mxu0 0
      %1431 = vmatpush2.bf16.msra.mxu0 %v1369
      %1432 = vmatprep.subr.bf16.mxu0 0
      %1433 = vmatpush2.bf16.msra.mxu0 %v1368
      %1434 = vmatprep.subr.bf16.mxu0 0
      %1435 = vmatpush2.bf16.msra.mxu0 %v1367
      %1436 = vmatprep.subr.bf16.mxu0 0
      %1437 = vmatpush2.bf16.msra.mxu0 %v1366
      %1438 = vmatprep.mubr.bf16.mxu0 %v1239
      %1439 = vmatmul.mubr.bf16.gmra.mxu0 %v1238
      %v1440 = vpop.f32.mrf.mxu0
      %v1441 = vadd.f32 0.0, %v1440
      %v1442 = vpop.f32.mrf.mxu0
      %v1443 = vpop.f32.mrf.mxu0
      %v1444 = vadd.f32 0.0, %v1443
      %v1445 = vpop.f32.mrf.mxu0
      %1446 = vmatprep.mubr.bf16.mxu0 %v1242
      %1447 = vmatmul.mubr.bf16.gmra.mxu0 %v1241
      %v1448 = vpop.f32.mrf.mxu0
      %v1449 = vadd.f32 0.0, %v1448
      %v1450 = vpop.f32.mrf.mxu0
      %v1451 = vpop.f32.mrf.mxu0
      %v1452 = vadd.f32 0.0, %v1451
      %v1453 = vpop.f32.mrf.mxu0
      %1454 = vmatprep.mubr.bf16.mxu0 %v1245
      %1455 = vmatmul.mubr.bf16.gmra.mxu0 %v1244
      %v1456 = vpop.f32.mrf.mxu0
      %v1457 = vadd.f32 0.0, %v1456
      %v1458 = vpop.f32.mrf.mxu0
      %v1459 = vpop.f32.mrf.mxu0
      %v1460 = vadd.f32 0.0, %v1459
      %v1461 = vpop.f32.mrf.mxu0
      %1462 = vmatprep.mubr.bf16.mxu0 %v1248
      %1463 = vmatmul.mubr.bf16.gmra.mxu0 %v1247
      %v1464 = vpop.f32.mrf.mxu0
      %v1465 = vadd.f32 0.0, %v1464
      %v1466 = vpop.f32.mrf.mxu0
      %v1467 = vpop.f32.mrf.mxu0
      %v1468 = vadd.f32 0.0, %v1467
      %v1469 = vpop.f32.mrf.mxu0
      %1470 = vdwg.mxu0
      %1471 = vmatprep.subr.bf16.mxu0 0
      %1472 = vmatpush1.bf16.msra.mxu0 %v1381
      %1473 = vmatprep.subr.bf16.mxu0 0
      %1474 = vmatpush1.bf16.msra.mxu0 %v1380
      %1475 = vmatprep.subr.bf16.mxu0 0
      %1476 = vmatpush1.bf16.msra.mxu0 %v1379
      %1477 = vmatprep.subr.bf16.mxu0 0
      %1478 = vmatpush1.bf16.msra.mxu0 %v1378
      %1479 = vmatprep.subr.bf16.mxu0 0
      %1480 = vmatpush1.bf16.msra.mxu0 %v1377
      %1481 = vmatprep.subr.bf16.mxu0 0
      %1482 = vmatpush1.bf16.msra.mxu0 %v1376
      %1483 = vmatprep.subr.bf16.mxu0 0
      %1484 = vmatpush1.bf16.msra.mxu0 %v1375
      %1485 = vmatprep.subr.bf16.mxu0 0
      %1486 = vmatpush1.bf16.msra.mxu0 %v1374
      %1487 = vmatprep.subr.bf16.mxu0 0
      %1488 = vmatpush2.bf16.msra.mxu0 0
      %1489 = vmatprep.subr.bf16.mxu0 0
      %1490 = vmatpush2.bf16.msra.mxu0 0
      %1491 = vmatprep.subr.bf16.mxu0 0
      %1492 = vmatpush2.bf16.msra.mxu0 0
      %1493 = vmatprep.subr.bf16.mxu0 0
      %1494 = vmatpush2.bf16.msra.mxu0 0
      %1495 = vmatprep.subr.bf16.mxu0 0
      %1496 = vmatpush2.bf16.msra.mxu0 0
      %1497 = vmatprep.subr.bf16.mxu0 0
      %1498 = vmatpush2.bf16.msra.mxu0 0
      %1499 = vmatprep.subr.bf16.mxu0 0
      %1500 = vmatpush2.bf16.msra.mxu0 0
      %1501 = vmatprep.subr.bf16.mxu0 0
      %1502 = vmatpush2.bf16.msra.mxu0 0
      %1503 = vmatprep.mubr.bf16.mxu0 0
      %1504 = vmatmul.mubr.bf16.gmra.mxu0 %v1240
      %v1505 = vpop.f32.mrf.mxu0
      %v1506 = vadd.f32 %v1441, %v1505
      %v1507 = vpop.f32.mrf.mxu0
      %v1508 = vpop.f32.mrf.mxu0
      %v1509 = vadd.f32 %v1444, %v1508
      %v1510 = vpop.f32.mrf.mxu0
      %1511 = vmatprep.mubr.bf16.mxu0 0
      %1512 = vmatmul.mubr.bf16.gmra.mxu0 %v1243
      %v1513 = vpop.f32.mrf.mxu0
      %v1514 = vadd.f32 %v1449, %v1513
      %v1515 = vpop.f32.mrf.mxu0
      %v1516 = vpop.f32.mrf.mxu0
      %v1517 = vadd.f32 %v1452, %v1516
      %v1518 = vpop.f32.mrf.mxu0
      %1519 = vmatprep.mubr.bf16.mxu0 0
      %1520 = vmatmul.mubr.bf16.gmra.mxu0 %v1246
      %v1521 = vpop.f32.mrf.mxu0
      %v1522 = vadd.f32 %v1457, %v1521
      %v1523 = vpop.f32.mrf.mxu0
      %v1524 = vpop.f32.mrf.mxu0
      %v1525 = vadd.f32 %v1460, %v1524
      %v1526 = vpop.f32.mrf.mxu0
      %1527 = vmatprep.mubr.bf16.mxu0 0
      %1528 = vmatmul.mubr.bf16.gmra.mxu0 %v1249
      %v1529 = vpop.f32.mrf.mxu0
      %v1530 = vadd.f32 %v1465, %v1529
      %v1531 = vpop.f32.mrf.mxu0
      %v1532 = vpop.f32.mrf.mxu0
      %v1533 = vadd.f32 %v1468, %v1532
      %v1534 = vpop.f32.mrf.mxu0
      %1535 = vdwg.mxu0
      %v1536 = vadd.f32 %v1103, %v1506
      %v1537 = vadd.f32 %v1106, %v1509
      %v1538 = vadd.f32 %v1111, %v1514
      %v1539 = vadd.f32 %v1114, %v1517
      %v1540 = vadd.f32 %v1119, %v1522
      %v1541 = vadd.f32 %v1122, %v1525
      %v1542 = vadd.f32 %v1127, %v1530
      %v1543 = vadd.f32 %v1130, %v1533
      %v1544 = vld [vmem:[%s3] sm:$0x1]
      %v1546 = vlaneseq
      %v1547 = vshrl.u32 %v1546, 7
      %v1548 = vsub.s32 0, %v1547
      %v1549 = vrot.slane %v1544, %v1548
      %v1551 = vadd.f32 %v1536, %v1549
      %v1552 = vadd.f32 %v1537, %v1549
      %v1553 = vadd.f32 %v1538, %v1549
      %v1554 = vadd.f32 %v1539, %v1549
      %v1555 = vadd.f32 %v1540, %v1549
      %v1556 = vadd.f32 %v1541, %v1549
      %v1557 = vadd.f32 %v1542, %v1549
      %v1558 = vadd.f32 %v1543, %v1549
      %v1559 = vmax.f32 %v1551, 0.0
      %v1560 = vmax.f32 %v1552, 0.0
      %v1561 = vmax.f32 %v1553, 0.0
      %v1562 = vmax.f32 %v1554, 0.0
      %v1563 = vmax.f32 %v1555, 0.0
      %v1564 = vmax.f32 %v1556, 0.0
      %v1565 = vmax.f32 %v1557, 0.0
      %v1566 = vmax.f32 %v1558, 0.0
      %v1567 = vpack.c.bf16 %v1560, %v1559
      %v1568 = vpack.c.bf16 %v1562, %v1561
      %v1569 = vpack.c.bf16 %v1564, %v1563
      %v1570 = vpack.c.bf16 %v1566, %v1565
      %v1571 = vld [vmem:[%s4] sm:$0xf]
      %v1572 = vld [vmem:[%s4 + $0x4] sm:$0xf]
      %v1573 = vld [vmem:[%s4 + $0x8] sm:$0xf]
      %v1574 = vld [vmem:[%s4 + $0xc] sm:$0xf]
      %v1575 = vld [vmem:[%s4 + $0x10] sm:$0xf]
      %v1576 = vld [vmem:[%s4 + $0x14] sm:$0xf]
      %v1577 = vld [vmem:[%s4 + $0x18] sm:$0xf]
      %v1578 = vld [vmem:[%s4 + $0x1c] sm:$0xf]
      %v1579 = vld [vmem:[%s4 + $0x20] sm:$0xf]
      %v1580 = vld [vmem:[%s4 + $0x24] sm:$0xf]
      %v1581 = vld [vmem:[%s4 + $0x28] sm:$0xf]
      %v1582 = vld [vmem:[%s4 + $0x2c] sm:$0xf]
      %v1583 = vld [vmem:[%s4 + $0x30] sm:$0xf]
      %v1584 = vld [vmem:[%s4 + $0x34] sm:$0xf]
      %v1585 = vld [vmem:[%s4 + $0x38] sm:$0xf]
      %v1586 = vld [vmem:[%s4 + $0x3c] sm:$0xf]
      %v1587 = vld [vmem:[%s5] sm:$0x1]
      %v1589 = vlaneseq
      %v1590 = vshrl.u32 %v1589, 7
      %v1591 = vsub.s32 0, %v1590
      %v1592 = vrot.slane %v1587, %v1591
      %v1610 = vunpack.c.l.b16 %v1571
      %v1611 = vunpack.c.l.b16 %v1572
      %v1612 = vunpack.c.l.b16 %v1573
      %v1613 = vunpack.c.l.b16 %v1574
      %v1614 = vunpack.c.l.b16 %v1575
      %v1615 = vunpack.c.l.b16 %v1576
      %v1616 = vunpack.c.l.b16 %v1577
      %v1617 = vunpack.c.l.b16 %v1578
      %v1618 = vunpack.c.l.b16 %v1579
      %v1619 = vunpack.c.l.b16 %v1580
      %v1620 = vunpack.c.l.b16 %v1581
      %v1621 = vunpack.c.l.b16 %v1582
      %v1622 = vunpack.c.l.b16 %v1583
      %v1623 = vunpack.c.l.b16 %v1584
      %v1624 = vunpack.c.l.b16 %v1585
      %v1625 = vunpack.c.l.b16 %v1586
      %v1626 = vpack.c.b16 %v1611, %v1610
      %v1627 = vpack.c.b16 %v1613, %v1612
      %v1628 = vpack.c.b16 %v1615, %v1614
      %v1629 = vpack.c.b16 %v1617, %v1616
      %v1630 = vpack.c.b16 %v1619, %v1618
      %v1631 = vpack.c.b16 %v1621, %v1620
      %v1632 = vpack.c.b16 %v1623, %v1622
      %v1633 = vpack.c.b16 %v1625, %v1624
      %1642 = vmatprep.subr.bf16.mxu0 0
      %1643 = vmatpush1.bf16.msra.mxu0 %v1633
      %1644 = vmatprep.subr.bf16.mxu0 0
      %1645 = vmatpush1.bf16.msra.mxu0 %v1632
      %1646 = vmatprep.subr.bf16.mxu0 0
      %1647 = vmatpush1.bf16.msra.mxu0 %v1631
      %1648 = vmatprep.subr.bf16.mxu0 0
      %1649 = vmatpush1.bf16.msra.mxu0 %v1630
      %1650 = vmatprep.subr.bf16.mxu0 0
      %1651 = vmatpush1.bf16.msra.mxu0 %v1629
      %1652 = vmatprep.subr.bf16.mxu0 0
      %1653 = vmatpush1.bf16.msra.mxu0 %v1628
      %1654 = vmatprep.subr.bf16.mxu0 0
      %1655 = vmatpush1.bf16.msra.mxu0 %v1627
      %1656 = vmatprep.subr.bf16.mxu0 0
      %1657 = vmatpush1.bf16.msra.mxu0 %v1626
      %1658 = vmatprep.subr.bf16.mxu0 0
      %1659 = vmatpush2.bf16.msra.mxu0 0
      %1660 = vmatprep.subr.bf16.mxu0 0
      %1661 = vmatpush2.bf16.msra.mxu0 0
      %1662 = vmatprep.subr.bf16.mxu0 0
      %1663 = vmatpush2.bf16.msra.mxu0 0
      %1664 = vmatprep.subr.bf16.mxu0 0
      %1665 = vmatpush2.bf16.msra.mxu0 0
      %1666 = vmatprep.subr.bf16.mxu0 0
      %1667 = vmatpush2.bf16.msra.mxu0 0
      %1668 = vmatprep.subr.bf16.mxu0 0
      %1669 = vmatpush2.bf16.msra.mxu0 0
      %1670 = vmatprep.subr.bf16.mxu0 0
      %1671 = vmatpush2.bf16.msra.mxu0 0
      %1672 = vmatprep.subr.bf16.mxu0 0
      %1673 = vmatpush2.bf16.msra.mxu0 0
      %1674 = vmatprep.mubr.bf16.mxu0 0
      %1675 = vmatmul.mubr.bf16.gmra.mxu0 %v1567
      %v1676 = vpop.f32.mrf.mxu0
      %v1677 = vadd.f32 %v1592, %v1676
      %v1678 = vpop.f32.mrf.mxu0
      %v1679 = vpop.f32.mrf.mxu0
      %v1680 = vadd.f32 %v1592, %v1679
      %v1681 = vpop.f32.mrf.mxu0
      %1682 = vmatprep.mubr.bf16.mxu0 0
      %1683 = vmatmul.mubr.bf16.gmra.mxu0 %v1568
      %v1684 = vpop.f32.mrf.mxu0
      %v1685 = vadd.f32 %v1592, %v1684
      %v1686 = vpop.f32.mrf.mxu0
      %v1687 = vpop.f32.mrf.mxu0
      %v1688 = vadd.f32 %v1592, %v1687
      %v1689 = vpop.f32.mrf.mxu0
      %1690 = vmatprep.mubr.bf16.mxu0 0
      %1691 = vmatmul.mubr.bf16.gmra.mxu0 %v1569
      %v1692 = vpop.f32.mrf.mxu0
      %v1693 = vadd.f32 %v1592, %v1692
      %v1694 = vpop.f32.mrf.mxu0
      %v1695 = vpop.f32.mrf.mxu0
      %v1696 = vadd.f32 %v1592, %v1695
      %v1697 = vpop.f32.mrf.mxu0
      %1698 = vmatprep.mubr.bf16.mxu0 0
      %1699 = vmatmul.mubr.bf16.gmra.mxu0 %v1570
      %v1700 = vpop.f32.mrf.mxu0
      %v1701 = vadd.f32 %v1592, %v1700
      %v1702 = vpop.f32.mrf.mxu0
      %v1703 = vpop.f32.mrf.mxu0
      %v1704 = vadd.f32 %v1592, %v1703
      %v1705 = vpop.f32.mrf.mxu0
      %1706 = vdwg.mxu0
      %v1707 = vld [vmem:[%s320] sm:$0xf]
      %v1708 = vld [vmem:[%s320 + $0x4] sm:$0xf]
      %v1709 = vld [vmem:[%s320 + $0x8] sm:$0xf]
      %v1710 = vld [vmem:[%s320 + $0xc] sm:$0xf]
      %v1711 = vld [vmem:[%s320 + $0x10] sm:$0xf]
      %v1712 = vld [vmem:[%s320 + $0x14] sm:$0xf]
      %v1713 = vld [vmem:[%s320 + $0x18] sm:$0xf]
      %v1714 = vld [vmem:[%s320 + $0x1c] sm:$0xf]
      %v1715 = vld [vmem:[%s6] sm:$0xf]
      %v1724 = vunpack.c.l.b16 %v1707
      %v1725 = vunpack.c.l.b16 %v1708
      %v1726 = vunpack.c.l.b16 %v1709
      %v1727 = vunpack.c.l.b16 %v1710
      %v1728 = vunpack.c.l.b16 %v1711
      %v1729 = vunpack.c.l.b16 %v1712
      %v1730 = vunpack.c.l.b16 %v1713
      %v1731 = vunpack.c.l.b16 %v1714
      %v1732 = vpack.c.b16 %v1725, %v1724
      %v1733 = vpack.c.b16 %v1727, %v1726
      %v1734 = vpack.c.b16 %v1729, %v1728
      %v1735 = vpack.c.b16 %v1731, %v1730
      %vm1736 = vcmask 64512
      %v1738 = vsel %vm1736, %v1732, 0
      %v1741 = vsel %vm1736, %v1733, 0
      %v1744 = vsel %vm1736, %v1734, 0
      %v1747 = vsel %vm1736, %v1735, 0
      %vm1749 = vcmask 1043456
      %v1751 = vsel %vm1749, %v1715, 0
      %1753 = vmatprep.subr.bf16.mxu0 0
      %1754 = vmatpush1.bf16.msra.mxu0 0
      %1755 = vmatprep.subr.bf16.mxu0 0
      %1756 = vmatpush1.bf16.msra.mxu0 0
      %1757 = vmatprep.subr.bf16.mxu0 0
      %1758 = vmatpush1.bf16.msra.mxu0 0
      %1759 = vmatprep.subr.bf16.mxu0 0
      %1760 = vmatpush1.bf16.msra.mxu0 0
      %1761 = vmatprep.subr.bf16.mxu0 0
      %1762 = vmatpush1.bf16.msra.mxu0 0
      %1763 = vmatprep.subr.bf16.mxu0 0
      %1764 = vmatpush1.bf16.msra.mxu0 0
      %1765 = vmatprep.subr.bf16.mxu0 0
      %1766 = vmatpush1.bf16.msra.mxu0 0
      %1767 = vmatprep.subr.bf16.mxu0 0
      %1768 = vmatpush1.bf16.msra.mxu0 %v1751
      %1769 = vmatprep.subr.bf16.mxu0 0
      %1770 = vmatpush2.bf16.msra.mxu0 0
      %1771 = vmatprep.subr.bf16.mxu0 0
      %1772 = vmatpush2.bf16.msra.mxu0 0
      %1773 = vmatprep.subr.bf16.mxu0 0
      %1774 = vmatpush2.bf16.msra.mxu0 0
      %1775 = vmatprep.subr.bf16.mxu0 0
      %1776 = vmatpush2.bf16.msra.mxu0 0
      %1777 = vmatprep.subr.bf16.mxu0 0
      %1778 = vmatpush2.bf16.msra.mxu0 0
      %1779 = vmatprep.subr.bf16.mxu0 0
      %1780 = vmatpush2.bf16.msra.mxu0 0
      %1781 = vmatprep.subr.bf16.mxu0 0
      %1782 = vmatpush2.bf16.msra.mxu0 0
      %1783 = vmatprep.subr.bf16.mxu0 0
      %1784 = vmatpush2.bf16.msra.mxu0 0
      %1785 = vmatprep.mubr.bf16.mxu0 0
      %1786 = vmatmul.mubr.bf16.gmra.mxu0 %v1738
      %v1787 = vpop.f32.mrf.mxu0
      %v1788 = vadd.f32 0.0, %v1787
      %v1789 = vpop.f32.mrf.mxu0
      %v1790 = vpop.f32.mrf.mxu0
      %v1791 = vadd.f32 0.0, %v1790
      %v1792 = vpop.f32.mrf.mxu0
      %1793 = vmatprep.mubr.bf16.mxu0 0
      %1794 = vmatmul.mubr.bf16.gmra.mxu0 %v1741
      %v1795 = vpop.f32.mrf.mxu0
      %v1796 = vadd.f32 0.0, %v1795
      %v1797 = vpop.f32.mrf.mxu0
      %v1798 = vpop.f32.mrf.mxu0
      %v1799 = vadd.f32 0.0, %v1798
      %v1800 = vpop.f32.mrf.mxu0
      %1801 = vmatprep.mubr.bf16.mxu0 0
      %1802 = vmatmul.mubr.bf16.gmra.mxu0 %v1744
      %v1803 = vpop.f32.mrf.mxu0
      %v1804 = vadd.f32 0.0, %v1803
      %v1805 = vpop.f32.mrf.mxu0
      %v1806 = vpop.f32.mrf.mxu0
      %v1807 = vadd.f32 0.0, %v1806
      %v1808 = vpop.f32.mrf.mxu0
      %1809 = vmatprep.mubr.bf16.mxu0 0
      %1810 = vmatmul.mubr.bf16.gmra.mxu0 %v1747
      %v1811 = vpop.f32.mrf.mxu0
      %v1812 = vadd.f32 0.0, %v1811
      %v1813 = vpop.f32.mrf.mxu0
      %v1814 = vpop.f32.mrf.mxu0
      %v1815 = vadd.f32 0.0, %v1814
      %v1816 = vpop.f32.mrf.mxu0
      %1817 = vdwg.mxu0
      %v1818 = vadd.f32 %v1677, %v1788
      %v1819 = vadd.f32 %v1680, %v1791
      %v1820 = vadd.f32 %v1685, %v1796
      %v1821 = vadd.f32 %v1688, %v1799
      %v1822 = vadd.f32 %v1693, %v1804
      %v1823 = vadd.f32 %v1696, %v1807
      %v1824 = vadd.f32 %v1701, %v1812
      %v1825 = vadd.f32 %v1704, %v1815
      %v1826 = vld [vmem:[%s7] sm:$0x1]
      %v1828 = vlaneseq
      %v1829 = vshrl.u32 %v1828, 7
      %v1830 = vsub.s32 0, %v1829
      %v1831 = vrot.slane %v1826, %v1830
      %v1833 = vadd.f32 %v1818, %v1831
      %v1834 = vadd.f32 %v1819, %v1831
      %v1835 = vadd.f32 %v1820, %v1831
      %v1836 = vadd.f32 %v1821, %v1831
      %v1837 = vadd.f32 %v1822, %v1831
      %v1838 = vadd.f32 %v1823, %v1831
      %v1839 = vadd.f32 %v1824, %v1831
      %v1840 = vadd.f32 %v1825, %v1831
      %v1841 = vmax.f32 %v1833, 0.0
      %v1842 = vmax.f32 %v1834, 0.0
      %v1843 = vmax.f32 %v1835, 0.0
      %v1844 = vmax.f32 %v1836, 0.0
      %v1845 = vmax.f32 %v1837, 0.0
      %v1846 = vmax.f32 %v1838, 0.0
      %v1847 = vmax.f32 %v1839, 0.0
      %v1848 = vmax.f32 %v1840, 0.0
      %1849 = vst [vmem:[%s325] sm:$0xff] %v1841
      %1850 = vst [vmem:[%s325 + $0x8] sm:$0xff] %v1842
      %1851 = vst [vmem:[%s325 + $0x10] sm:$0xff] %v1843
      %1852 = vst [vmem:[%s325 + $0x18] sm:$0xff] %v1844
      %1853 = vst [vmem:[%s325 + $0x20] sm:$0xff] %v1845
      %1854 = vst [vmem:[%s325 + $0x28] sm:$0xff] %v1846
      %1855 = vst [vmem:[%s325 + $0x30] sm:$0xff] %v1847
      %1856 = vst [vmem:[%s325 + $0x38] sm:$0xff] %v1848
      %p1857 = scmp.lt.s32.totalorder %s19, 1
      %s1858 = scalar_select %p1857, %s19, 1
      %s1859 = smul.addr %s1858, 8
      %s1860 = smul.addr %s1859, 8
      %s1861 = scalar_lea.vmem %s8, %s1860
      // Predicated region
      $region53: #{_lambda_.3} parent=51 // pred_check
        %p1862 = pneg %p215
      $region54: #{_lambda_.3} parent=51 // pred_check_branch
        %1864 = sbr.rel (%p1862) target = $region56
      $region55: #{_lambda_.3} parent=51 // pred_region
        _
      $region56: #{_lambda_.3} parent=51 // pred_fallthru
        _
    $region52: #{_lambda_.3} parent=5 // pred_fallthru
      _
    %p1865 = scmp.le.s32.totalorder 2, %s14
    // Predicated region
    $region57: #{_lambda_.3} parent=5 // pred_check
      %p1866 = pneg %p1865
    $region58: #{_lambda_.3} parent=5 // pred_check_branch
      %1868 = sbr.rel (%p1866) target = $region60
    $region59: #{_lambda_.3} parent=5 // pred_region
      %s1869 = ssub.s32 %s14, 2
      // Predicated region
      $region61: #{_lambda_.3} parent=59 // pred_check
        %p1870 = pneg %p221
      $region62: #{_lambda_.3} parent=59 // pred_check_branch
        %1872 = sbr.rel (%p1870) target = $region64
      $region63: #{_lambda_.3} parent=59 // pred_region
        %p1873 = scmp.lt.s32.totalorder %s20, 1
        %s1874 = scalar_select %p1873, %s20, 1
        %s1875 = smul.addr %s1874, 8
        %s1876 = smul.addr %s1875, 8
        %s1877 = scalar_lea.vmem %s8, %s1876
      $region64: #{_lambda_.3} parent=59 // pred_fallthru
        _
    $region60: #{_lambda_.3} parent=5 // pred_fallthru
      _
  $region6: #{_lambda_.3} parent=0 // loop_footer
    %s18 = sadd.s32 1, %s14
  $region7: #{_lambda_.3} parent=0 // loop_footer_branch
    %13 = sbr.rel target = $region3
  $region8: #{_lambda_.3} parent=0 // loop_exit
    _

</llo_original>
